<compile_context>
chip_gen: v5e
topology: v5e:2x2
jax: 0.10.0
libtpu: 0.0.40
codegen_flags: <defaults>
</compile_context>

<pallas_src>
import functools

import jax
import jax.numpy as jnp
from jax import lax
from jax.experimental import pallas as pl
from jax.experimental.pallas import tpu as pltpu


_LANE = 1024        # lane-dense slab width (multiple of 128 -> unmasked vst)
_BLOCK_ROWS = 512   # 512*1024*4B = 2 MiB/block; 8 MiB total with double-buffered in+out


def _round_up(x, m):
    return (x + m - 1) // m * m


def _srl(x, k):
    """Logical right shift for int32 (arithmetic shift + mask of high bits)."""
    return (x >> k) & jnp.int32((1 << (32 - k)) - 1)


def _fmix32(x):
    """murmur3 finalizer: bijective int32 mixer with strong avalanche."""
    x = x ^ _srl(x, 16)
    x = x * jnp.int32(-2048144789)   # 0x85EBCA6B
    x = x ^ _srl(x, 13)
    x = x * jnp.int32(-1028477387)   # 0xC2B2AE35
    x = x ^ _srl(x, 16)
    return x


def _uniform01(bits):
    """Top 24 bits -> exact float32 uniform in [0, 1)."""
    return _srl(bits, 8).astype(jnp.float32) * jnp.float32(1.0 / (1 << 24))


def _gaussian_noise_kernel(seed_ref, x_ref, o_ref, *, std):
    rows, lanes = x_ref.shape
    half = lanes // 2            # 512: still a multiple of 128 (lane-aligned)

    # One counter per Box-Muller pair; each pair consumes two PRNG draws and
    # produces the noise for element (r, c) and element (r, c + half).
    # Counter-based PRNG => every tile (and each v7x TensorCore under
    # "parallel") draws distinct, tile-size-independent noise while staying
    # deterministic in the seed.
    tile_base = pl.program_id(0) * (rows * half)
    row_ids = lax.broadcasted_iota(jnp.int32, (rows, half), 0)
    col_ids = lax.broadcasted_iota(jnp.int32, (rows, half), 1)
    pair_idx = tile_base + row_ids * half + col_ids

    seed_mix = seed_ref[0] * jnp.int32(-1640531527)           # seed * 0x9E3779B9
    base = pair_idx * 2 + seed_mix + jnp.int32(1540483477)    # + 0x5BD1E995
    u1 = _uniform01(_fmix32(base))
    u2 = _uniform01(_fmix32(base + 1))

    # Box-Muller, using BOTH outputs of the transform: 2 EUP ops / element
    # (log+sqrt+cos+sin per 2 elements); adds/muls stay on the VPU, so the
    # kernel remains at the HBM roofline for an elementwise op.
    r = jnp.sqrt(-2.0 * jnp.log(1.0 - u1))                    # 1-u1 in (0, 1]
    theta = (2.0 * jnp.pi) * u2
    z0 = r * jnp.cos(theta)
    z1 = r * jnp.sin(theta)

    std_f = jnp.float32(std)
    # TODO(synk): add a bf16 noise/compute path for bf16 activations on v6e/v7x
    # (keep the f32 path on v5e, which has no bf16 VPU/EUP).
    o_ref[:, :half] = (x_ref[:, :half].astype(jnp.float32) + z0 * std_f).astype(o_ref.dtype)
    o_ref[:, half:] = (x_ref[:, half:].astype(jnp.float32) + z1 * std_f).astype(o_ref.dtype)


def gaussian_noise(x, seed, std=0.1, training=True):
    """Pallas implementation of GaussianNoise.forward."""
    if not training:
        # Eval mode is the identity in the PyTorch module.
        return x

    orig_shape = x.shape
    n = x.size
    flat = x.reshape(-1)

    # Lane-dense 2D slab: (rows, 1024), rows a multiple of the block; pad tail.
    rows = pl.cdiv(n, _LANE)
    block_rows = min(_BLOCK_ROWS, _round_up(rows, 8))
    rows_padded = _round_up(rows, block_rows)
    pad = rows_padded * _LANE - n
    if pad:
        flat = jnp.pad(flat, (0, pad))
    x2d = flat.reshape(rows_padded, _LANE)

    seed_arr = jnp.asarray([seed], dtype=jnp.int32)

    out2d = pl.pallas_call(
        functools.partial(_gaussian_noise_kernel, std=float(std)),
        out_shape=jax.ShapeDtypeStruct(x2d.shape, x2d.dtype),
        grid_spec=pltpu.PrefetchScalarGridSpec(
            num_scalar_prefetch=1,                       # seed lands in SMEM
            grid=(rows_padded // block_rows,),
            in_specs=[pl.BlockSpec((block_rows, _LANE), lambda i, seed: (i, 0))],
            out_specs=pl.BlockSpec((block_rows, _LANE), lambda i, seed: (i, 0)),
        ),
        compiler_params=pltpu.CompilerParams(
            dimension_semantics=("parallel",),           # shard across v7x TCs
        ),
        input_output_aliases={1: 0},                     # donate x2d -> output
    )(seed_arr, x2d)

    out_flat = out2d.reshape(-1)
    if pad:
        out_flat = out_flat[:n]
    return out_flat.reshape(orig_shape)


if __name__ == "__main__":
    key = jax.random.PRNGKey(0)
    x = jax.random.normal(key, (2, 4, 16, 16), dtype=jnp.float32)  # NCHW

    # Training-mode forward (noise generated + added inside the Pallas kernel).
    y = gaussian_noise(x, seed=0, std=0.1, training=True)
    y = jax.block_until_ready(y)

    assert y.shape == x.shape and y.dtype == x.dtype

    # Sanity: noise ~ N(0, 0.1^2).
    noise = y - x
    noise_std = float(jnp.std(noise))
    noise_mean = float(jnp.mean(noise))
    assert 0.05 < noise_std < 0.2, f"unexpected noise std {noise_std}"
    assert abs(noise_mean) < 0.05, f"unexpected noise mean {noise_mean}"

    # Determinism: same seed -> same output.
    y2 = gaussian_noise(x, seed=0, std=0.1, training=True)
    assert bool(jnp.all(y2 == y))

    # Different seed -> different noise.
    y3 = gaussian_noise(x, seed=1, std=0.1, training=True)
    assert not bool(jnp.all(y3 == y))

    # Eval-mode forward is identity.
    y_eval = gaussian_noise(x, seed=0, std=0.1, training=False)
    assert bool(jnp.all(y_eval == x))

    print("KERNEL_OK")
</pallas_src>

<mosaic_0001>
module attributes {stable_mosaic.version = 11 : i64} {
  func.func @_gaussian_noise_kernel(%arg0: i32, %arg1: memref<1xi32, #tpu.memory_space<smem>>, %arg2: memref<8x1024xf32, #tpu.memory_space<vmem>>, %arg3: memref<8x1024xf32, #tpu.memory_space<vmem>>) attributes {dimension_semantics = [#tpu.dimension_semantics<parallel>], iteration_bounds = array<i64: 1>, scalar_prefetch = 1 : i64, scratch_operands = 0 : i64, tpu.core_type = #tpu.core_type<tc>, window_params = [{transform_indices = @transform_0, window_bounds = array<i64: 8, 1024>}, {transform_indices = @transform_1, window_bounds = array<i64: 8, 1024>}]} {
    %c4096_i32 = arith.constant 4096 : i32
    %0 = arith.muli %arg0, %c4096_i32 : i32
    %1 = tpu.iota {dimensions = array<i32: 0>} : vector<8x512xi32>
    %2 = tpu.iota {dimensions = array<i32: 1>} : vector<8x512xi32>
    %c512_i32 = arith.constant 512 : i32
    %3 = vector.broadcast %c512_i32 : i32 to vector<8x512xi32>
    %4 = arith.muli %1, %3 : vector<8x512xi32>
    %5 = vector.broadcast %0 : i32 to vector<8x512xi32>
    %6 = arith.addi %5, %4 : vector<8x512xi32>
    %7 = arith.addi %6, %2 : vector<8x512xi32>
    %c0 = arith.constant 0 : index
    %8 = memref.load %arg1[%c0] : memref<1xi32, #tpu.memory_space<smem>>
    %c-1640531527_i32 = arith.constant -1640531527 : i32
    %9 = arith.muli %8, %c-1640531527_i32 : i32
    %c2_i32 = arith.constant 2 : i32
    %10 = vector.broadcast %c2_i32 : i32 to vector<8x512xi32>
    %11 = arith.muli %7, %10 : vector<8x512xi32>
    %12 = vector.broadcast %9 : i32 to vector<8x512xi32>
    %13 = arith.addi %11, %12 : vector<8x512xi32>
    %c1540483477_i32 = arith.constant 1540483477 : i32
    %14 = vector.broadcast %c1540483477_i32 : i32 to vector<8x512xi32>
    %15 = arith.addi %13, %14 : vector<8x512xi32>
    %c16_i32 = arith.constant 16 : i32
    %16 = vector.broadcast %c16_i32 : i32 to vector<8x512xi32>
    %17 = arith.shrsi %15, %16 : vector<8x512xi32>
    %c65535_i32 = arith.constant 65535 : i32
    %18 = vector.broadcast %c65535_i32 : i32 to vector<8x512xi32>
    %19 = arith.andi %17, %18 : vector<8x512xi32>
    %20 = arith.xori %15, %19 : vector<8x512xi32>
    %c-2048144789_i32 = arith.constant -2048144789 : i32
    %21 = vector.broadcast %c-2048144789_i32 : i32 to vector<8x512xi32>
    %22 = arith.muli %20, %21 : vector<8x512xi32>
    %c13_i32 = arith.constant 13 : i32
    %23 = vector.broadcast %c13_i32 : i32 to vector<8x512xi32>
    %24 = arith.shrsi %22, %23 : vector<8x512xi32>
    %c524287_i32 = arith.constant 524287 : i32
    %25 = vector.broadcast %c524287_i32 : i32 to vector<8x512xi32>
    %26 = arith.andi %24, %25 : vector<8x512xi32>
    %27 = arith.xori %22, %26 : vector<8x512xi32>
    %c-1028477387_i32 = arith.constant -1028477387 : i32
    %28 = vector.broadcast %c-1028477387_i32 : i32 to vector<8x512xi32>
    %29 = arith.muli %27, %28 : vector<8x512xi32>
    %c16_i32_0 = arith.constant 16 : i32
    %30 = vector.broadcast %c16_i32_0 : i32 to vector<8x512xi32>
    %31 = arith.shrsi %29, %30 : vector<8x512xi32>
    %c65535_i32_1 = arith.constant 65535 : i32
    %32 = vector.broadcast %c65535_i32_1 : i32 to vector<8x512xi32>
    %33 = arith.andi %31, %32 : vector<8x512xi32>
    %34 = arith.xori %29, %33 : vector<8x512xi32>
    %c8_i32 = arith.constant 8 : i32
    %35 = vector.broadcast %c8_i32 : i32 to vector<8x512xi32>
    %36 = arith.shrsi %34, %35 : vector<8x512xi32>
    %c16777215_i32 = arith.constant 16777215 : i32
    %37 = vector.broadcast %c16777215_i32 : i32 to vector<8x512xi32>
    %38 = arith.andi %36, %37 : vector<8x512xi32>
    %39 = arith.sitofp %38 : vector<8x512xi32> to vector<8x512xf32>
    %cst = arith.constant 5.96046448E-8 : f32
    %40 = vector.broadcast %cst : f32 to vector<8x512xf32>
    %41 = arith.mulf %39, %40 : vector<8x512xf32>
    %c1_i32 = arith.constant 1 : i32
    %42 = vector.broadcast %c1_i32 : i32 to vector<8x512xi32>
    %43 = arith.addi %15, %42 : vector<8x512xi32>
    %c16_i32_2 = arith.constant 16 : i32
    %44 = vector.broadcast %c16_i32_2 : i32 to vector<8x512xi32>
    %45 = arith.shrsi %43, %44 : vector<8x512xi32>
    %c65535_i32_3 = arith.constant 65535 : i32
    %46 = vector.broadcast %c65535_i32_3 : i32 to vector<8x512xi32>
    %47 = arith.andi %45, %46 : vector<8x512xi32>
    %48 = arith.xori %43, %47 : vector<8x512xi32>
    %c-2048144789_i32_4 = arith.constant -2048144789 : i32
    %49 = vector.broadcast %c-2048144789_i32_4 : i32 to vector<8x512xi32>
    %50 = arith.muli %48, %49 : vector<8x512xi32>
    %c13_i32_5 = arith.constant 13 : i32
    %51 = vector.broadcast %c13_i32_5 : i32 to vector<8x512xi32>
    %52 = arith.shrsi %50, %51 : vector<8x512xi32>
    %c524287_i32_6 = arith.constant 524287 : i32
    %53 = vector.broadcast %c524287_i32_6 : i32 to vector<8x512xi32>
    %54 = arith.andi %52, %53 : vector<8x512xi32>
    %55 = arith.xori %50, %54 : vector<8x512xi32>
    %c-1028477387_i32_7 = arith.constant -1028477387 : i32
    %56 = vector.broadcast %c-1028477387_i32_7 : i32 to vector<8x512xi32>
    %57 = arith.muli %55, %56 : vector<8x512xi32>
    %c16_i32_8 = arith.constant 16 : i32
    %58 = vector.broadcast %c16_i32_8 : i32 to vector<8x512xi32>
    %59 = arith.shrsi %57, %58 : vector<8x512xi32>
    %c65535_i32_9 = arith.constant 65535 : i32
    %60 = vector.broadcast %c65535_i32_9 : i32 to vector<8x512xi32>
    %61 = arith.andi %59, %60 : vector<8x512xi32>
    %62 = arith.xori %57, %61 : vector<8x512xi32>
    %c8_i32_10 = arith.constant 8 : i32
    %63 = vector.broadcast %c8_i32_10 : i32 to vector<8x512xi32>
    %64 = arith.shrsi %62, %63 : vector<8x512xi32>
    %c16777215_i32_11 = arith.constant 16777215 : i32
    %65 = vector.broadcast %c16777215_i32_11 : i32 to vector<8x512xi32>
    %66 = arith.andi %64, %65 : vector<8x512xi32>
    %67 = arith.sitofp %66 : vector<8x512xi32> to vector<8x512xf32>
    %cst_12 = arith.constant 5.96046448E-8 : f32
    %68 = vector.broadcast %cst_12 : f32 to vector<8x512xf32>
    %69 = arith.mulf %67, %68 : vector<8x512xf32>
    %cst_13 = arith.constant 1.000000e+00 : f32
    %70 = vector.broadcast %cst_13 : f32 to vector<8x512xf32>
    %71 = arith.subf %70, %41 : vector<8x512xf32>
    %72 = math.log %71 : vector<8x512xf32>
    %cst_14 = arith.constant -2.000000e+00 : f32
    %73 = vector.broadcast %cst_14 : f32 to vector<8x512xf32>
    %74 = arith.mulf %73, %72 : vector<8x512xf32>
    %75 = math.sqrt %74 : vector<8x512xf32>
    %cst_15 = arith.constant 6.28318548 : f32
    %76 = vector.broadcast %cst_15 : f32 to vector<8x512xf32>
    %77 = arith.mulf %76, %69 : vector<8x512xf32>
    %78 = math.cos %77 : vector<8x512xf32>
    %79 = arith.mulf %75, %78 : vector<8x512xf32>
    %80 = math.sin %77 : vector<8x512xf32>
    %81 = arith.mulf %75, %80 : vector<8x512xf32>
    %c0_16 = arith.constant 0 : index
    %c0_17 = arith.constant 0 : index
    %82 = vector.load %arg2[%c0_16, %c0_17] : memref<8x1024xf32, #tpu.memory_space<vmem>>, vector<8x512xf32>
    %cst_18 = arith.constant 1.000000e-01 : f32
    %83 = vector.broadcast %cst_18 : f32 to vector<8x512xf32>
    %84 = arith.mulf %79, %83 : vector<8x512xf32>
    %85 = arith.addf %82, %84 : vector<8x512xf32>
    %c0_19 = arith.constant 0 : index
    %c0_20 = arith.constant 0 : index
    %86 = vector.load %arg3[%c0_19, %c0_20] : memref<8x1024xf32, #tpu.memory_space<vmem>>, vector<8x512xf32>
    tpu.vector_store %arg3[%c0_19, %c0_20], %85 {strides = array<i32>} : memref<8x1024xf32, #tpu.memory_space<vmem>>, vector<8x512xf32>,
    %c0_21 = arith.constant 0 : index
    %c512 = arith.constant 512 : index
    %87 = vector.load %arg2[%c0_21, %c512] : memref<8x1024xf32, #tpu.memory_space<vmem>>, vector<8x512xf32>
    %cst_22 = arith.constant 1.000000e-01 : f32
    %88 = vector.broadcast %cst_22 : f32 to vector<8x512xf32>
    %89 = arith.mulf %81, %88 : vector<8x512xf32>
    %90 = arith.addf %87, %89 : vector<8x512xf32>
    %c0_23 = arith.constant 0 : index
    %c512_24 = arith.constant 512 : index
    %91 = vector.load %arg3[%c0_23, %c512_24] : memref<8x1024xf32, #tpu.memory_space<vmem>>, vector<8x512xf32>
    tpu.vector_store %arg3[%c0_23, %c512_24], %90 {strides = array<i32>} : memref<8x1024xf32, #tpu.memory_space<vmem>>, vector<8x512xf32>,
    return
  }
  func.func @transform_0(%arg0: i32, %arg1: memref<1xi32, #tpu.memory_space<smem>>) -> (i32, i32) {
    %c0_i32 = arith.constant 0 : i32
    %c0_i32_0 = arith.constant 0 : i32
    return %arg0, %c0_i32 : i32, i32
  }
  func.func @transform_1(%arg0: i32, %arg1: memref<1xi32, #tpu.memory_space<smem>>) -> (i32, i32) {
    %c0_i32 = arith.constant 0 : i32
    %c0_i32_0 = arith.constant 0 : i32
    return %arg0, %c0_i32 : i32, i32
  }
}

</mosaic_0001>

<llo_original>
// kernel: tpu_custom_call.1
$region0: #{tpu_custom_call.1}
  #allocation0 [shape = 'u32[]', space=smem, size = 0x4, offset = 0x4, fixed_abs, tag = 'smem constant byte address 0x4 - core index']
  #allocation1 [shape = 'u32[72,128]{1,0:T(1,128)}', space=vmem, size = 0x9000, scoped, tag = 'internal scratch']
  #allocation2 [shape = 's32[1]{0}', space=sflag, size = 0x4, scoped, tag = 'scoped memory for tpu_custom_call.1']
  #allocation3 [shape = 's32[1]{0:T(128)S(6)}', space=smem, size = 0x200, scoped, tag = 'prefetched SMEM operand 0']
  %s0 = inlined_call_operand.<no memory space> [shape: s32[1], index: 0, kind: input, shape index: {}]
  %s1 = inlined_call_operand.hbm [shape: f32[8,1024], index: 1, kind: input, shape index: {}, may-alias: {1,2}]
  %s2 = inlined_call_operand.hbm [shape: f32[8,1024], index: 2, kind: output, shape index: {}, may-alias: {1,2}]
  %s3 = sld [smem:[#allocation0]]
  $region18: #{tpu_custom_call.1} parent=0
    _
  %s5 = ssub.s32 1, %s3
  %s6 = scalar_select 0, %s5, %s3
  %7 = sst [smem:[#allocation3]] %s0
  $region1: #{tpu_custom_call.1} parent=0
    #allocation4 [shape = 'u8[32768]{0}', space=vmem, size = 0x8000, scoped, tag = 'input window, operand 1, single buffered']
    #allocation5 [shape = 's32[1]{0}', space=sflag, size = 0x4, scoped, tag = 'scoped memory for tpu_custom_call.1']
    #allocation6 [shape = 's32[1]{0}', space=sflag, size = 0x4, scoped, tag = 'scoped memory for tpu_custom_call.1']
    #allocation7 [shape = 'u8[32768]{0}', space=vmem, size = 0x8000, scoped, tag = 'output window, operand 0, single buffered']
    %8 = vsyncpa [#allocation5], 0
    %9 = vsyncpa [#allocation6], 0
    // Predicated region
    $region2: #{tpu_custom_call.1} parent=1 // pred_check
      _
    $region3: #{tpu_custom_call.1} parent=1 // pred_check_branch
      %11 = sbr.rel (0) target = $region5
    $region4: #{tpu_custom_call.1} parent=1 // pred_region
      %13 = vsyncadd [#allocation5], 0
      %s15 = sshll.u32 %s1, 4
      %s16 = int_to_ptr.hbm [resolvable:$true] %s15
      %s17 = sshll.u32 [#allocation4], 4
      %s18 = int_to_ptr.vmem [resolvable:$true] %s17
      %20 = dma.hbm_to_vmem [thread:$0]  %s16, 1024, %s18, [#allocation5]
    $region5: #{tpu_custom_call.1} parent=1 // pred_fallthru
      _
    // Predicated region
    $region6: #{tpu_custom_call.1} parent=1 // pred_check
      _
    $region7: #{tpu_custom_call.1} parent=1 // pred_check_branch
      %22 = sbr.rel (0) target = $region9
    $region8: #{tpu_custom_call.1} parent=1 // pred_region
      %24 = dma.done [#allocation5], 1024
    $region9: #{tpu_custom_call.1} parent=1 // pred_fallthru
      _
    %s25 = smul.u32 0, 4096
    %v26 = vlaneseq
    %v27 = vshrl.u32 %v26, 7
    %v28 = vlaneseq
    %v29 = vand.u32 %v28, 127
    %v30 = vadd.s32 %v29, 128
    %v31 = vadd.s32 %v29, 256
    %v32 = vadd.s32 %v29, 384
    %v33 = vmul.u32 %v27, 512
    %v34 = vstv %s25
    %v35 = vadd.s32 %v34, %v33
    %v36 = vadd.s32 %v35, %v29
    %v37 = vadd.s32 %v35, %v30
    %v38 = vadd.s32 %v35, %v31
    %v39 = vadd.s32 %v35, %v32
    %s40 = sld [smem:[#allocation3]]
    %s41 = smul.u32 %s40, 2654435769
    %v42 = vmul.u32 %v36, 2
    %v43 = vmul.u32 %v37, 2
    %v44 = vmul.u32 %v38, 2
    %v45 = vmul.u32 %v39, 2
    %v46 = vstv %s41
    %v47 = vadd.s32 %v42, %v46
    %v48 = vadd.s32 %v43, %v46
    %v49 = vadd.s32 %v44, %v46
    %v50 = vadd.s32 %v45, %v46
    %v51 = vadd.s32 %v47, 1540483477
    %v52 = vadd.s32 %v48, 1540483477
    %v53 = vadd.s32 %v49, 1540483477
    %v54 = vadd.s32 %v50, 1540483477
    %v55 = vshra.s32 %v51, 16
    %v56 = vshra.s32 %v52, 16
    %v57 = vshra.s32 %v53, 16
    %v58 = vshra.s32 %v54, 16
    %v59 = vand.u32 %v55, 65535
    %v60 = vand.u32 %v56, 65535
    %v61 = vand.u32 %v57, 65535
    %v62 = vand.u32 %v58, 65535
    %v63 = vxor.u32 %v51, %v59
    %v64 = vxor.u32 %v52, %v60
    %v65 = vxor.u32 %v53, %v61
    %v66 = vxor.u32 %v54, %v62
    %v67 = vmul.u32 %v63, 2246822507
    %v68 = vmul.u32 %v64, 2246822507
    %v69 = vmul.u32 %v65, 2246822507
    %v70 = vmul.u32 %v66, 2246822507
    %v71 = vshra.s32 %v67, 13
    %v72 = vshra.s32 %v68, 13
    %v73 = vshra.s32 %v69, 13
    %v74 = vshra.s32 %v70, 13
    %v75 = vand.u32 %v71, 524287
    %v76 = vand.u32 %v72, 524287
    %v77 = vand.u32 %v73, 524287
    %v78 = vand.u32 %v74, 524287
    %v79 = vxor.u32 %v67, %v75
    %v80 = vxor.u32 %v68, %v76
    %v81 = vxor.u32 %v69, %v77
    %v82 = vxor.u32 %v70, %v78
    %v83 = vmul.u32 %v79, 3266489909
    %v84 = vmul.u32 %v80, 3266489909
    %v85 = vmul.u32 %v81, 3266489909
    %v86 = vmul.u32 %v82, 3266489909
    %v87 = vshra.s32 %v83, 16
    %v88 = vshra.s32 %v84, 16
    %v89 = vshra.s32 %v85, 16
    %v90 = vshra.s32 %v86, 16
    %v91 = vand.u32 %v87, 65535
    %v92 = vand.u32 %v88, 65535
    %v93 = vand.u32 %v89, 65535
    %v94 = vand.u32 %v90, 65535
    %v95 = vxor.u32 %v83, %v91
    %v96 = vxor.u32 %v84, %v92
    %v97 = vxor.u32 %v85, %v93
    %v98 = vxor.u32 %v86, %v94
    %v99 = vshra.s32 %v95, 8
    %v100 = vshra.s32 %v96, 8
    %v101 = vshra.s32 %v97, 8
    %v102 = vshra.s32 %v98, 8
    %v103 = vand.u32 %v99, 16777215
    %v104 = vand.u32 %v100, 16777215
    %v105 = vand.u32 %v101, 16777215
    %v106 = vand.u32 %v102, 16777215
    %v107 = vcvt.s32.f32 %v103
    %v108 = vcvt.s32.f32 %v104
    %v109 = vcvt.s32.f32 %v105
    %v110 = vcvt.s32.f32 %v106
    %v111 = vmul.f32 %v107, 5.9604645e-08
    %v112 = vmul.f32 %v108, 5.9604645e-08
    %v113 = vmul.f32 %v109, 5.9604645e-08
    %v114 = vmul.f32 %v110, 5.9604645e-08
    %v115 = vadd.s32 %v51, 1
    %v116 = vadd.s32 %v52, 1
    %v117 = vadd.s32 %v53, 1
    %v118 = vadd.s32 %v54, 1
    %v119 = vshra.s32 %v115, 16
    %v120 = vshra.s32 %v116, 16
    %v121 = vshra.s32 %v117, 16
    %v122 = vshra.s32 %v118, 16
    %v123 = vand.u32 %v119, 65535
    %v124 = vand.u32 %v120, 65535
    %v125 = vand.u32 %v121, 65535
    %v126 = vand.u32 %v122, 65535
    %v127 = vxor.u32 %v115, %v123
    %v128 = vxor.u32 %v116, %v124
    %v129 = vxor.u32 %v117, %v125
    %v130 = vxor.u32 %v118, %v126
    %v131 = vmul.u32 %v127, 2246822507
    %v132 = vmul.u32 %v128, 2246822507
    %v133 = vmul.u32 %v129, 2246822507
    %v134 = vmul.u32 %v130, 2246822507
    %v135 = vshra.s32 %v131, 13
    %v136 = vshra.s32 %v132, 13
    %v137 = vshra.s32 %v133, 13
    %v138 = vshra.s32 %v134, 13
    %v139 = vand.u32 %v135, 524287
    %v140 = vand.u32 %v136, 524287
    %v141 = vand.u32 %v137, 524287
    %v142 = vand.u32 %v138, 524287
    %v143 = vxor.u32 %v131, %v139
    %v144 = vxor.u32 %v132, %v140
    %v145 = vxor.u32 %v133, %v141
    %v146 = vxor.u32 %v134, %v142
    %v147 = vmul.u32 %v143, 3266489909
    %v148 = vmul.u32 %v144, 3266489909
    %v149 = vmul.u32 %v145, 3266489909
    %v150 = vmul.u32 %v146, 3266489909
    %v151 = vshra.s32 %v147, 16
    %v152 = vshra.s32 %v148, 16
    %v153 = vshra.s32 %v149, 16
    %v154 = vshra.s32 %v150, 16
    %v155 = vand.u32 %v151, 65535
    %v156 = vand.u32 %v152, 65535
    %v157 = vand.u32 %v153, 65535
    %v158 = vand.u32 %v154, 65535
    %v159 = vxor.u32 %v147, %v155
    %v160 = vxor.u32 %v148, %v156
    %v161 = vxor.u32 %v149, %v157
    %v162 = vxor.u32 %v150, %v158
    %v163 = vshra.s32 %v159, 8
    %v164 = vshra.s32 %v160, 8
    %v165 = vshra.s32 %v161, 8
    %v166 = vshra.s32 %v162, 8
    %v167 = vand.u32 %v163, 16777215
    %v168 = vand.u32 %v164, 16777215
    %v169 = vand.u32 %v165, 16777215
    %v170 = vand.u32 %v166, 16777215
    %v171 = vcvt.s32.f32 %v167
    %v172 = vcvt.s32.f32 %v168
    %v173 = vcvt.s32.f32 %v169
    %v174 = vcvt.s32.f32 %v170
    %v175 = vmul.f32 %v171, 5.9604645e-08
    %v176 = vmul.f32 %v172, 5.9604645e-08
    %v177 = vmul.f32 %v173, 5.9604645e-08
    %v178 = vmul.f32 %v174, 5.9604645e-08
    %v179 = vsub.f32 1.0, %v111
    %v180 = vsub.f32 1.0, %v112
    %v181 = vsub.f32 1.0, %v113
    %v182 = vsub.f32 1.0, %v114
    %v183 = vlog2.pop %v179
    %v184 = vmul.f32 %v183, 0.6931472
    %v185 = vlog2.pop %v180
    %v186 = vmul.f32 %v185, 0.6931472
    %v187 = vlog2.pop %v181
    %v188 = vmul.f32 %v187, 0.6931472
    %v189 = vlog2.pop %v182
    %v190 = vmul.f32 %v189, 0.6931472
    %v191 = vmul.f32 %v184, -2.0
    %v192 = vmul.f32 %v186, -2.0
    %v193 = vmul.f32 %v188, -2.0
    %v194 = vmul.f32 %v190, -2.0
    %v195 = vrsqrt.pop %v191
    %v196 = vmul.f32 %v195, %v191
    %v197 = vmul.f32 %v196, %v195
    %v198 = vmul.f32 0.5, %v197
    %v199 = vsub.f32 1.5, %v198
    %v200 = vmul.f32 %v195, %v199
    %v201 = vmul.f32 %v191, %v200
    %vm202 = vcmp.eq.f32.partialorder %v191, inf
    %v203 = vsel %vm202, %v191, %v201
    %vm204 = vcmp.eq.f32.partialorder %v191, 0.0
    %v205 = vand.u32 %v191, 2147483648
    %v206 = vsel %vm204, %v205, %v203
    %v207 = vrsqrt.pop %v192
    %v208 = vmul.f32 %v207, %v192
    %v209 = vmul.f32 %v208, %v207
    %v210 = vmul.f32 0.5, %v209
    %v211 = vsub.f32 1.5, %v210
    %v212 = vmul.f32 %v207, %v211
    %v213 = vmul.f32 %v192, %v212
    %vm214 = vcmp.eq.f32.partialorder %v192, inf
    %v215 = vsel %vm214, %v192, %v213
    %vm216 = vcmp.eq.f32.partialorder %v192, 0.0
    %v217 = vand.u32 %v192, 2147483648
    %v218 = vsel %vm216, %v217, %v215
    %v219 = vrsqrt.pop %v193
    %v220 = vmul.f32 %v219, %v193
    %v221 = vmul.f32 %v220, %v219
    %v222 = vmul.f32 0.5, %v221
    %v223 = vsub.f32 1.5, %v222
    %v224 = vmul.f32 %v219, %v223
    %v225 = vmul.f32 %v193, %v224
    %vm226 = vcmp.eq.f32.partialorder %v193, inf
    %v227 = vsel %vm226, %v193, %v225
    %vm228 = vcmp.eq.f32.partialorder %v193, 0.0
    %v229 = vand.u32 %v193, 2147483648
    %v230 = vsel %vm228, %v229, %v227
    %v231 = vrsqrt.pop %v194
    %v232 = vmul.f32 %v231, %v194
    %v233 = vmul.f32 %v232, %v231
    %v234 = vmul.f32 0.5, %v233
    %v235 = vsub.f32 1.5, %v234
    %v236 = vmul.f32 %v231, %v235
    %v237 = vmul.f32 %v194, %v236
    %vm238 = vcmp.eq.f32.partialorder %v194, inf
    %v239 = vsel %vm238, %v194, %v237
    %vm240 = vcmp.eq.f32.partialorder %v194, 0.0
    %v241 = vand.u32 %v194, 2147483648
    %v242 = vsel %vm240, %v241, %v239
    %v243 = vmul.f32 %v175, 6.2831855
    %v244 = vmul.f32 %v176, 6.2831855
    %v245 = vmul.f32 %v177, 6.2831855
    %v246 = vmul.f32 %v178, 6.2831855
    %v247 = vand.u32 2147483647, %v243
    %vm248 = vcmp.le.f32.partialorder %v247, 0.7853982
    %vm249 = vcmp.lt.s32.totalorder %v243, 0
    %v250 = vand.u32 %v243, 2139095040
    %v251 = vshrl.u32 %v250, 23
    %v252 = vsub.s32 %v251, 127
    %v253 = vand.u32 2147483647, %v243
    %v254 = vand.u32 %v253, 8388607
    %v255 = vor.u32 %v254, 8388608
    %v256 = vsub.s32 0, %v255
    %v257 = vadd.s32 %v252, 1
    %vm258 = vcmp.gt.s32.totalorder %v257, 0
    %v259 = vsel %vm258, %v257, 0
    %v260 = vshrl.u32 %v259, 5
    %v261 = vand.u32 %v259, 31
    %v262 = vsub.s32 32, %v261
    %v263 = vshrl.u32 683565275, %v262
    %v264 = vshll.u32 683565275, %v261
    %v265 = vshrl.u32 2475754826, %v262
    %v266 = vor.u32 %v264, %v265
    %v267 = vshll.u32 2475754826, %v261
    %v268 = vshrl.u32 2131351028, %v262
    %v269 = vor.u32 %v267, %v268
    %v270 = vshll.u32 2131351028, %v261
    %v271 = vshrl.u32 2102212464, %v262
    %v272 = vor.u32 %v270, %v271
    %v273 = vshll.u32 2102212464, %v261
    %v274 = vshrl.u32 920167782, %v262
    %v275 = vor.u32 %v273, %v274
    %v276 = vshll.u32 920167782, %v261
    %v277 = vshrl.u32 1326507024, %v262
    %v278 = vor.u32 %v276, %v277
    %vm279 = vcmp.lt.s32.totalorder %v260, 1
    %vm280 = vcmp.lt.s32.totalorder %v260, 2
    %vm281 = vcmp.lt.s32.totalorder %v260, 3
    %vm282 = vcmp.lt.s32.totalorder %v260, 4
    %v283 = vsel %vm279, %v263, %v266
    %v284 = vsel %vm282, %v272, 2102212464
    %v285 = vsel %vm281, %v269, %v284
    %v286 = vsel %vm280, %v283, %v285
    %v287 = vsel %vm279, %v266, %v269
    %v288 = vsel %vm282, %v275, 920167782
    %v289 = vsel %vm281, %v272, %v288
    %v290 = vsel %vm280, %v287, %v289
    %v291 = vsel %vm279, %v269, %v272
    %v292 = vsel %vm282, %v278, 1326507024
    %v293 = vsel %vm281, %v275, %v292
    %v294 = vsel %vm280, %v291, %v293
    %v295 = vshll.u32 %v255, 8
    %v296 = vand.u32 %v295, 65535
    %v297 = vshrl.u32 %v295, 16
    %v298 = vand.u32 %v294, 65535
    %v299 = vshrl.u32 %v294, 16
    %v300 = vmul.u32 %v296, %v298
    %v301 = vmul.u32 %v296, %v299
    %v302 = vmul.u32 %v297, %v298
    %v303 = vmul.u32 %v297, %v299
    %v304 = vshll.u32 %v301, 16
    %v305 = vshrl.u32 %v301, 16
    %v306 = vshll.u32 %v302, 16
    %v307 = vshrl.u32 %v302, 16
    %vm308 = vc.u32 %v300, %v304
    %v309 = vsel %vm308, 1, 0
    %v310 = vadd.s32 %v300, %v304
    %v311 = vadd.s32 %v303, %v309
    %vm312 = vc.u32 %v310, %v306
    %v313 = vsel %vm312, 1, 0
    %v314 = vadd.s32 %v310, %v306
    %v315 = vadd.s32 %v311, %v313
    %v316 = vadd.s32 %v315, %v305
    %v317 = vadd.s32 %v316, %v307
    %v318 = vand.u32 %v295, 65535
    %v319 = vshrl.u32 %v295, 16
    %v320 = vand.u32 %v290, 65535
    %v321 = vshrl.u32 %v290, 16
    %v322 = vmul.u32 %v318, %v320
    %v323 = vmul.u32 %v318, %v321
    %v324 = vmul.u32 %v319, %v320
    %v325 = vmul.u32 %v319, %v321
    %v326 = vshll.u32 %v323, 16
    %v327 = vshrl.u32 %v323, 16
    %v328 = vshll.u32 %v324, 16
    %v329 = vshrl.u32 %v324, 16
    %vm330 = vc.u32 %v322, %v326
    %v331 = vsel %vm330, 1, 0
    %v332 = vadd.s32 %v322, %v326
    %v333 = vadd.s32 %v325, %v331
    %vm334 = vc.u32 %v332, %v328
    %v335 = vsel %vm334, 1, 0
    %v336 = vadd.s32 %v332, %v328
    %v337 = vadd.s32 %v333, %v335
    %v338 = vadd.s32 %v337, %v327
    %v339 = vadd.s32 %v338, %v329
    %v340 = vmul.u32 %v295, %v286
    %v341 = vadd.s32 %v317, %v336
    %vm342 = vc.u32 %v317, %v336
    %v343 = vadd.s32 %v339, 1
    %v344 = vsel %vm342, %v343, %v339
    %v345 = vadd.s32 %v340, %v344
    %v346 = vadd.s32 %v345, 536870912
    %v347 = vshrl.u32 %v346, 30
    %v348 = vshll.u32 %v347, 30
    %v349 = vsub.s32 %v345, %v348
    %vm350 = vcmp.lt.s32.totalorder %v349, 0
    %v351 = vsub.s32 0, %v349
    %v352 = vsel %vm350, %v351, %v349
    %v353 = vclz %v352
    %v354 = vsub.s32 %v353, 2
    %vm355 = vcmp.gt.s32.totalorder 0, %v354
    %v356 = vsel %vm355, 0, %v354
    %v357 = vsub.s32 32, %v356
    %v358 = vshll.u32 %v349, %v356
    %v359 = vshrl.u32 %v341, %v357
    %v360 = vor.u32 %v358, %v359
    %v361 = vsub.s32 4294967266, %v356
    %v362 = vadd.s32 %v361, 127
    %v363 = vshll.u32 %v362, 23
    %v364 = vor.u32 4788187, %v363
    %v365 = vand.u32 2147483647, %v364
    %v367 = vcvt.s32.f32 %v360
    %v368 = vmul.f32 %v367, %v365
    %v369 = vxor.u32 %v368, 2147483648
    %v370 = vsel %vm249, %v369, %v368
    %v371 = vsub.s32 4, %v347
    %v372 = vsel %vm249, %v371, %v347
    %v373 = vsel %vm248, %v243, %v370
    %v374 = vsel %vm248, 0, %v372
    %v375 = vmul.f32 %v373, %v373
    %v376 = vmul.f32 %v375, -0.001358992
    %v377 = vadd.f32 %v376, 0.041655596
    %v378 = vmul.f32 %v375, %v377
    %v379 = vadd.f32 %v378, -0.4999988
    %v380 = vmul.f32 %v375, %v379
    %v381 = vadd.f32 1.0, %v380
    %v382 = vmul.f32 %v373, %v373
    %v383 = vmul.f32 %v382, -0.00019511016
    %v384 = vadd.f32 %v383, 0.008332121
    %v385 = vmul.f32 %v382, %v384
    %v386 = vadd.f32 %v385, -0.16666654
    %v387 = vmul.f32 %v382, %v386
    %v388 = vadd.f32 %v387, 1.0
    %v389 = vmul.f32 %v388, %v373
    %vm390 = vweird.f32 %v243
    %v391 = vand.u32 %v374, 3
    %vm392 = vcmp.lt.s32.totalorder %v391, 2
    %vm393 = vcmp.eq.s32.totalorder %v391, 0
    %v394 = vxor.u32 %v389, 2147483648
    %v395 = vsel %vm393, %v381, %v394
    %vm396 = vcmp.eq.s32.totalorder %v391, 2
    %v397 = vxor.u32 %v381, 2147483648
    %v398 = vsel %vm396, %v397, %v389
    %v399 = vsel %vm392, %v395, %v398
    %v400 = vsel %vm390, nan, %v399
    %v401 = vand.u32 2147483647, %v244
    %vm402 = vcmp.le.f32.partialorder %v401, 0.7853982
    %vm403 = vcmp.lt.s32.totalorder %v244, 0
    %v404 = vand.u32 %v244, 2139095040
    %v405 = vshrl.u32 %v404, 23
    %v406 = vsub.s32 %v405, 127
    %v407 = vand.u32 2147483647, %v244
    %v408 = vand.u32 %v407, 8388607
    %v409 = vor.u32 %v408, 8388608
    %v410 = vsub.s32 0, %v409
    %v411 = vadd.s32 %v406, 1
    %vm412 = vcmp.gt.s32.totalorder %v411, 0
    %v413 = vsel %vm412, %v411, 0
    %v414 = vshrl.u32 %v413, 5
    %v415 = vand.u32 %v413, 31
    %v416 = vsub.s32 32, %v415
    %v417 = vshrl.u32 683565275, %v416
    %v418 = vshll.u32 683565275, %v415
    %v419 = vshrl.u32 2475754826, %v416
    %v420 = vor.u32 %v418, %v419
    %v421 = vshll.u32 2475754826, %v415
    %v422 = vshrl.u32 2131351028, %v416
    %v423 = vor.u32 %v421, %v422
    %v424 = vshll.u32 2131351028, %v415
    %v425 = vshrl.u32 2102212464, %v416
    %v426 = vor.u32 %v424, %v425
    %v427 = vshll.u32 2102212464, %v415
    %v428 = vshrl.u32 920167782, %v416
    %v429 = vor.u32 %v427, %v428
    %v430 = vshll.u32 920167782, %v415
    %v431 = vshrl.u32 1326507024, %v416
    %v432 = vor.u32 %v430, %v431
    %vm433 = vcmp.lt.s32.totalorder %v414, 1
    %vm434 = vcmp.lt.s32.totalorder %v414, 2
    %vm435 = vcmp.lt.s32.totalorder %v414, 3
    %vm436 = vcmp.lt.s32.totalorder %v414, 4
    %v437 = vsel %vm433, %v417, %v420
    %v438 = vsel %vm436, %v426, 2102212464
    %v439 = vsel %vm435, %v423, %v438
    %v440 = vsel %vm434, %v437, %v439
    %v441 = vsel %vm433, %v420, %v423
    %v442 = vsel %vm436, %v429, 920167782
    %v443 = vsel %vm435, %v426, %v442
    %v444 = vsel %vm434, %v441, %v443
    %v445 = vsel %vm433, %v423, %v426
    %v446 = vsel %vm436, %v432, 1326507024
    %v447 = vsel %vm435, %v429, %v446
    %v448 = vsel %vm434, %v445, %v447
    %v449 = vshll.u32 %v409, 8
    %v450 = vand.u32 %v449, 65535
    %v451 = vshrl.u32 %v449, 16
    %v452 = vand.u32 %v448, 65535
    %v453 = vshrl.u32 %v448, 16
    %v454 = vmul.u32 %v450, %v452
    %v455 = vmul.u32 %v450, %v453
    %v456 = vmul.u32 %v451, %v452
    %v457 = vmul.u32 %v451, %v453
    %v458 = vshll.u32 %v455, 16
    %v459 = vshrl.u32 %v455, 16
    %v460 = vshll.u32 %v456, 16
    %v461 = vshrl.u32 %v456, 16
    %vm462 = vc.u32 %v454, %v458
    %v463 = vsel %vm462, 1, 0
    %v464 = vadd.s32 %v454, %v458
    %v465 = vadd.s32 %v457, %v463
    %vm466 = vc.u32 %v464, %v460
    %v467 = vsel %vm466, 1, 0
    %v468 = vadd.s32 %v464, %v460
    %v469 = vadd.s32 %v465, %v467
    %v470 = vadd.s32 %v469, %v459
    %v471 = vadd.s32 %v470, %v461
    %v472 = vand.u32 %v449, 65535
    %v473 = vshrl.u32 %v449, 16
    %v474 = vand.u32 %v444, 65535
    %v475 = vshrl.u32 %v444, 16
    %v476 = vmul.u32 %v472, %v474
    %v477 = vmul.u32 %v472, %v475
    %v478 = vmul.u32 %v473, %v474
    %v479 = vmul.u32 %v473, %v475
    %v480 = vshll.u32 %v477, 16
    %v481 = vshrl.u32 %v477, 16
    %v482 = vshll.u32 %v478, 16
    %v483 = vshrl.u32 %v478, 16
    %vm484 = vc.u32 %v476, %v480
    %v485 = vsel %vm484, 1, 0
    %v486 = vadd.s32 %v476, %v480
    %v487 = vadd.s32 %v479, %v485
    %vm488 = vc.u32 %v486, %v482
    %v489 = vsel %vm488, 1, 0
    %v490 = vadd.s32 %v486, %v482
    %v491 = vadd.s32 %v487, %v489
    %v492 = vadd.s32 %v491, %v481
    %v493 = vadd.s32 %v492, %v483
    %v494 = vmul.u32 %v449, %v440
    %v495 = vadd.s32 %v471, %v490
    %vm496 = vc.u32 %v471, %v490
    %v497 = vadd.s32 %v493, 1
    %v498 = vsel %vm496, %v497, %v493
    %v499 = vadd.s32 %v494, %v498
    %v500 = vadd.s32 %v499, 536870912
    %v501 = vshrl.u32 %v500, 30
    %v502 = vshll.u32 %v501, 30
    %v503 = vsub.s32 %v499, %v502
    %vm504 = vcmp.lt.s32.totalorder %v503, 0
    %v505 = vsub.s32 0, %v503
    %v506 = vsel %vm504, %v505, %v503
    %v507 = vclz %v506
    %v508 = vsub.s32 %v507, 2
    %vm509 = vcmp.gt.s32.totalorder 0, %v508
    %v510 = vsel %vm509, 0, %v508
    %v511 = vsub.s32 32, %v510
    %v512 = vshll.u32 %v503, %v510
    %v513 = vshrl.u32 %v495, %v511
    %v514 = vor.u32 %v512, %v513
    %v515 = vsub.s32 4294967266, %v510
    %v516 = vadd.s32 %v515, 127
    %v517 = vshll.u32 %v516, 23
    %v518 = vor.u32 4788187, %v517
    %v519 = vand.u32 2147483647, %v518
    %v521 = vcvt.s32.f32 %v514
    %v522 = vmul.f32 %v521, %v519
    %v523 = vxor.u32 %v522, 2147483648
    %v524 = vsel %vm403, %v523, %v522
    %v525 = vsub.s32 4, %v501
    %v526 = vsel %vm403, %v525, %v501
    %v527 = vsel %vm402, %v244, %v524
    %v528 = vsel %vm402, 0, %v526
    %v529 = vmul.f32 %v527, %v527
    %v530 = vmul.f32 %v529, -0.001358992
    %v531 = vadd.f32 %v530, 0.041655596
    %v532 = vmul.f32 %v529, %v531
    %v533 = vadd.f32 %v532, -0.4999988
    %v534 = vmul.f32 %v529, %v533
    %v535 = vadd.f32 1.0, %v534
    %v536 = vmul.f32 %v527, %v527
    %v537 = vmul.f32 %v536, -0.00019511016
    %v538 = vadd.f32 %v537, 0.008332121
    %v539 = vmul.f32 %v536, %v538
    %v540 = vadd.f32 %v539, -0.16666654
    %v541 = vmul.f32 %v536, %v540
    %v542 = vadd.f32 %v541, 1.0
    %v543 = vmul.f32 %v542, %v527
    %vm544 = vweird.f32 %v244
    %v545 = vand.u32 %v528, 3
    %vm546 = vcmp.lt.s32.totalorder %v545, 2
    %vm547 = vcmp.eq.s32.totalorder %v545, 0
    %v548 = vxor.u32 %v543, 2147483648
    %v549 = vsel %vm547, %v535, %v548
    %vm550 = vcmp.eq.s32.totalorder %v545, 2
    %v551 = vxor.u32 %v535, 2147483648
    %v552 = vsel %vm550, %v551, %v543
    %v553 = vsel %vm546, %v549, %v552
    %v554 = vsel %vm544, nan, %v553
    %v555 = vand.u32 2147483647, %v245
    %vm556 = vcmp.le.f32.partialorder %v555, 0.7853982
    %vm557 = vcmp.lt.s32.totalorder %v245, 0
    %v558 = vand.u32 %v245, 2139095040
    %v559 = vshrl.u32 %v558, 23
    %v560 = vsub.s32 %v559, 127
    %v561 = vand.u32 2147483647, %v245
    %v562 = vand.u32 %v561, 8388607
    %v563 = vor.u32 %v562, 8388608
    %v564 = vsub.s32 0, %v563
    %v565 = vadd.s32 %v560, 1
    %vm566 = vcmp.gt.s32.totalorder %v565, 0
    %v567 = vsel %vm566, %v565, 0
    %v568 = vshrl.u32 %v567, 5
    %v569 = vand.u32 %v567, 31
    %v570 = vsub.s32 32, %v569
    %v571 = vshrl.u32 683565275, %v570
    %v572 = vshll.u32 683565275, %v569
    %v573 = vshrl.u32 2475754826, %v570
    %v574 = vor.u32 %v572, %v573
    %v575 = vshll.u32 2475754826, %v569
    %v576 = vshrl.u32 2131351028, %v570
    %v577 = vor.u32 %v575, %v576
    %v578 = vshll.u32 2131351028, %v569
    %v579 = vshrl.u32 2102212464, %v570
    %v580 = vor.u32 %v578, %v579
    %v581 = vshll.u32 2102212464, %v569
    %v582 = vshrl.u32 920167782, %v570
    %v583 = vor.u32 %v581, %v582
    %v584 = vshll.u32 920167782, %v569
    %v585 = vshrl.u32 1326507024, %v570
    %v586 = vor.u32 %v584, %v585
    %vm587 = vcmp.lt.s32.totalorder %v568, 1
    %vm588 = vcmp.lt.s32.totalorder %v568, 2
    %vm589 = vcmp.lt.s32.totalorder %v568, 3
    %vm590 = vcmp.lt.s32.totalorder %v568, 4
    %v591 = vsel %vm587, %v571, %v574
    %v592 = vsel %vm590, %v580, 2102212464
    %v593 = vsel %vm589, %v577, %v592
    %v594 = vsel %vm588, %v591, %v593
    %v595 = vsel %vm587, %v574, %v577
    %v596 = vsel %vm590, %v583, 920167782
    %v597 = vsel %vm589, %v580, %v596
    %v598 = vsel %vm588, %v595, %v597
    %v599 = vsel %vm587, %v577, %v580
    %v600 = vsel %vm590, %v586, 1326507024
    %v601 = vsel %vm589, %v583, %v600
    %v602 = vsel %vm588, %v599, %v601
    %v603 = vshll.u32 %v563, 8
    %v604 = vand.u32 %v603, 65535
    %v605 = vshrl.u32 %v603, 16
    %v606 = vand.u32 %v602, 65535
    %v607 = vshrl.u32 %v602, 16
    %v608 = vmul.u32 %v604, %v606
    %v609 = vmul.u32 %v604, %v607
    %v610 = vmul.u32 %v605, %v606
    %v611 = vmul.u32 %v605, %v607
    %v612 = vshll.u32 %v609, 16
    %v613 = vshrl.u32 %v609, 16
    %v614 = vshll.u32 %v610, 16
    %v615 = vshrl.u32 %v610, 16
    %vm616 = vc.u32 %v608, %v612
    %v617 = vsel %vm616, 1, 0
    %v618 = vadd.s32 %v608, %v612
    %v619 = vadd.s32 %v611, %v617
    %vm620 = vc.u32 %v618, %v614
    %v621 = vsel %vm620, 1, 0
    %v622 = vadd.s32 %v618, %v614
    %v623 = vadd.s32 %v619, %v621
    %v624 = vadd.s32 %v623, %v613
    %v625 = vadd.s32 %v624, %v615
    %v626 = vand.u32 %v603, 65535
    %v627 = vshrl.u32 %v603, 16
    %v628 = vand.u32 %v598, 65535
    %v629 = vshrl.u32 %v598, 16
    %v630 = vmul.u32 %v626, %v628
    %v631 = vmul.u32 %v626, %v629
    %v632 = vmul.u32 %v627, %v628
    %v633 = vmul.u32 %v627, %v629
    %v634 = vshll.u32 %v631, 16
    %v635 = vshrl.u32 %v631, 16
    %v636 = vshll.u32 %v632, 16
    %v637 = vshrl.u32 %v632, 16
    %vm638 = vc.u32 %v630, %v634
    %v639 = vsel %vm638, 1, 0
    %v640 = vadd.s32 %v630, %v634
    %v641 = vadd.s32 %v633, %v639
    %vm642 = vc.u32 %v640, %v636
    %v643 = vsel %vm642, 1, 0
    %v644 = vadd.s32 %v640, %v636
    %v645 = vadd.s32 %v641, %v643
    %v646 = vadd.s32 %v645, %v635
    %v647 = vadd.s32 %v646, %v637
    %v648 = vmul.u32 %v603, %v594
    %v649 = vadd.s32 %v625, %v644
    %vm650 = vc.u32 %v625, %v644
    %v651 = vadd.s32 %v647, 1
    %v652 = vsel %vm650, %v651, %v647
    %v653 = vadd.s32 %v648, %v652
    %v654 = vadd.s32 %v653, 536870912
    %v655 = vshrl.u32 %v654, 30
    %v656 = vshll.u32 %v655, 30
    %v657 = vsub.s32 %v653, %v656
    %vm658 = vcmp.lt.s32.totalorder %v657, 0
    %v659 = vsub.s32 0, %v657
    %v660 = vsel %vm658, %v659, %v657
    %v661 = vclz %v660
    %v662 = vsub.s32 %v661, 2
    %vm663 = vcmp.gt.s32.totalorder 0, %v662
    %v664 = vsel %vm663, 0, %v662
    %v665 = vsub.s32 32, %v664
    %v666 = vshll.u32 %v657, %v664
    %v667 = vshrl.u32 %v649, %v665
    %v668 = vor.u32 %v666, %v667
    %v669 = vsub.s32 4294967266, %v664
    %v670 = vadd.s32 %v669, 127
    %v671 = vshll.u32 %v670, 23
    %v672 = vor.u32 4788187, %v671
    %v673 = vand.u32 2147483647, %v672
    %v675 = vcvt.s32.f32 %v668
    %v676 = vmul.f32 %v675, %v673
    %v677 = vxor.u32 %v676, 2147483648
    %v678 = vsel %vm557, %v677, %v676
    %v679 = vsub.s32 4, %v655
    %v680 = vsel %vm557, %v679, %v655
    %v681 = vsel %vm556, %v245, %v678
    %v682 = vsel %vm556, 0, %v680
    %v683 = vmul.f32 %v681, %v681
    %v684 = vmul.f32 %v683, -0.001358992
    %v685 = vadd.f32 %v684, 0.041655596
    %v686 = vmul.f32 %v683, %v685
    %v687 = vadd.f32 %v686, -0.4999988
    %v688 = vmul.f32 %v683, %v687
    %v689 = vadd.f32 1.0, %v688
    %v690 = vmul.f32 %v681, %v681
    %v691 = vmul.f32 %v690, -0.00019511016
    %v692 = vadd.f32 %v691, 0.008332121
    %v693 = vmul.f32 %v690, %v692
    %v694 = vadd.f32 %v693, -0.16666654
    %v695 = vmul.f32 %v690, %v694
    %v696 = vadd.f32 %v695, 1.0
    %v697 = vmul.f32 %v696, %v681
    %vm698 = vweird.f32 %v245
    %v699 = vand.u32 %v682, 3
    %vm700 = vcmp.lt.s32.totalorder %v699, 2
    %vm701 = vcmp.eq.s32.totalorder %v699, 0
    %v702 = vxor.u32 %v697, 2147483648
    %v703 = vsel %vm701, %v689, %v702
    %vm704 = vcmp.eq.s32.totalorder %v699, 2
    %v705 = vxor.u32 %v689, 2147483648
    %v706 = vsel %vm704, %v705, %v697
    %v707 = vsel %vm700, %v703, %v706
    %v708 = vsel %vm698, nan, %v707
    %v709 = vand.u32 2147483647, %v246
    %vm710 = vcmp.le.f32.partialorder %v709, 0.7853982
    %vm711 = vcmp.lt.s32.totalorder %v246, 0
    %v712 = vand.u32 %v246, 2139095040
    %v713 = vshrl.u32 %v712, 23
    %v714 = vsub.s32 %v713, 127
    %v715 = vand.u32 2147483647, %v246
    %v716 = vand.u32 %v715, 8388607
    %v717 = vor.u32 %v716, 8388608
    %v718 = vsub.s32 0, %v717
    %v719 = vadd.s32 %v714, 1
    %vm720 = vcmp.gt.s32.totalorder %v719, 0
    %v721 = vsel %vm720, %v719, 0
    %v722 = vshrl.u32 %v721, 5
    %v723 = vand.u32 %v721, 31
    %v724 = vsub.s32 32, %v723
    %v725 = vshrl.u32 683565275, %v724
    %v726 = vshll.u32 683565275, %v723
    %v727 = vshrl.u32 2475754826, %v724
    %v728 = vor.u32 %v726, %v727
    %v729 = vshll.u32 2475754826, %v723
    %v730 = vshrl.u32 2131351028, %v724
    %v731 = vor.u32 %v729, %v730
    %v732 = vshll.u32 2131351028, %v723
    %v733 = vshrl.u32 2102212464, %v724
    %v734 = vor.u32 %v732, %v733
    %v735 = vshll.u32 2102212464, %v723
    %v736 = vshrl.u32 920167782, %v724
    %v737 = vor.u32 %v735, %v736
    %v738 = vshll.u32 920167782, %v723
    %v739 = vshrl.u32 1326507024, %v724
    %v740 = vor.u32 %v738, %v739
    %vm741 = vcmp.lt.s32.totalorder %v722, 1
    %vm742 = vcmp.lt.s32.totalorder %v722, 2
    %vm743 = vcmp.lt.s32.totalorder %v722, 3
    %vm744 = vcmp.lt.s32.totalorder %v722, 4
    %v745 = vsel %vm741, %v725, %v728
    %v746 = vsel %vm744, %v734, 2102212464
    %v747 = vsel %vm743, %v731, %v746
    %v748 = vsel %vm742, %v745, %v747
    %v749 = vsel %vm741, %v728, %v731
    %v750 = vsel %vm744, %v737, 920167782
    %v751 = vsel %vm743, %v734, %v750
    %v752 = vsel %vm742, %v749, %v751
    %v753 = vsel %vm741, %v731, %v734
    %v754 = vsel %vm744, %v740, 1326507024
    %v755 = vsel %vm743, %v737, %v754
    %v756 = vsel %vm742, %v753, %v755
    %v757 = vshll.u32 %v717, 8
    %v758 = vand.u32 %v757, 65535
    %v759 = vshrl.u32 %v757, 16
    %v760 = vand.u32 %v756, 65535
    %v761 = vshrl.u32 %v756, 16
    %v762 = vmul.u32 %v758, %v760
    %v763 = vmul.u32 %v758, %v761
    %v764 = vmul.u32 %v759, %v760
    %v765 = vmul.u32 %v759, %v761
    %v766 = vshll.u32 %v763, 16
    %v767 = vshrl.u32 %v763, 16
    %v768 = vshll.u32 %v764, 16
    %v769 = vshrl.u32 %v764, 16
    %vm770 = vc.u32 %v762, %v766
    %v771 = vsel %vm770, 1, 0
    %v772 = vadd.s32 %v762, %v766
    %v773 = vadd.s32 %v765, %v771
    %vm774 = vc.u32 %v772, %v768
    %v775 = vsel %vm774, 1, 0
    %v776 = vadd.s32 %v772, %v768
    %v777 = vadd.s32 %v773, %v775
    %v778 = vadd.s32 %v777, %v767
    %v779 = vadd.s32 %v778, %v769
    %v780 = vand.u32 %v757, 65535
    %v781 = vshrl.u32 %v757, 16
    %v782 = vand.u32 %v752, 65535
    %v783 = vshrl.u32 %v752, 16
    %v784 = vmul.u32 %v780, %v782
    %v785 = vmul.u32 %v780, %v783
    %v786 = vmul.u32 %v781, %v782
    %v787 = vmul.u32 %v781, %v783
    %v788 = vshll.u32 %v785, 16
    %v789 = vshrl.u32 %v785, 16
    %v790 = vshll.u32 %v786, 16
    %v791 = vshrl.u32 %v786, 16
    %vm792 = vc.u32 %v784, %v788
    %v793 = vsel %vm792, 1, 0
    %v794 = vadd.s32 %v784, %v788
    %v795 = vadd.s32 %v787, %v793
    %vm796 = vc.u32 %v794, %v790
    %v797 = vsel %vm796, 1, 0
    %v798 = vadd.s32 %v794, %v790
    %v799 = vadd.s32 %v795, %v797
    %v800 = vadd.s32 %v799, %v789
    %v801 = vadd.s32 %v800, %v791
    %v802 = vmul.u32 %v757, %v748
    %v803 = vadd.s32 %v779, %v798
    %vm804 = vc.u32 %v779, %v798
    %v805 = vadd.s32 %v801, 1
    %v806 = vsel %vm804, %v805, %v801
    %v807 = vadd.s32 %v802, %v806
    %v808 = vadd.s32 %v807, 536870912
    %v809 = vshrl.u32 %v808, 30
    %v810 = vshll.u32 %v809, 30
    %v811 = vsub.s32 %v807, %v810
    %vm812 = vcmp.lt.s32.totalorder %v811, 0
    %v813 = vsub.s32 0, %v811
    %v814 = vsel %vm812, %v813, %v811
    %v815 = vclz %v814
    %v816 = vsub.s32 %v815, 2
    %vm817 = vcmp.gt.s32.totalorder 0, %v816
    %v818 = vsel %vm817, 0, %v816
    %v819 = vsub.s32 32, %v818
    %v820 = vshll.u32 %v811, %v818
    %v821 = vshrl.u32 %v803, %v819
    %v822 = vor.u32 %v820, %v821
    %v823 = vsub.s32 4294967266, %v818
    %v824 = vadd.s32 %v823, 127
    %v825 = vshll.u32 %v824, 23
    %v826 = vor.u32 4788187, %v825
    %v827 = vand.u32 2147483647, %v826
    %v829 = vcvt.s32.f32 %v822
    %v830 = vmul.f32 %v829, %v827
    %v831 = vxor.u32 %v830, 2147483648
    %v832 = vsel %vm711, %v831, %v830
    %v833 = vsub.s32 4, %v809
    %v834 = vsel %vm711, %v833, %v809
    %v835 = vsel %vm710, %v246, %v832
    %v836 = vsel %vm710, 0, %v834
    %v837 = vmul.f32 %v835, %v835
    %v838 = vmul.f32 %v837, -0.001358992
    %v839 = vadd.f32 %v838, 0.041655596
    %v840 = vmul.f32 %v837, %v839
    %v841 = vadd.f32 %v840, -0.4999988
    %v842 = vmul.f32 %v837, %v841
    %v843 = vadd.f32 1.0, %v842
    %v844 = vmul.f32 %v835, %v835
    %v845 = vmul.f32 %v844, -0.00019511016
    %v846 = vadd.f32 %v845, 0.008332121
    %v847 = vmul.f32 %v844, %v846
    %v848 = vadd.f32 %v847, -0.16666654
    %v849 = vmul.f32 %v844, %v848
    %v850 = vadd.f32 %v849, 1.0
    %v851 = vmul.f32 %v850, %v835
    %vm852 = vweird.f32 %v246
    %v853 = vand.u32 %v836, 3
    %vm854 = vcmp.lt.s32.totalorder %v853, 2
    %vm855 = vcmp.eq.s32.totalorder %v853, 0
    %v856 = vxor.u32 %v851, 2147483648
    %v857 = vsel %vm855, %v843, %v856
    %vm858 = vcmp.eq.s32.totalorder %v853, 2
    %v859 = vxor.u32 %v843, 2147483648
    %v860 = vsel %vm858, %v859, %v851
    %v861 = vsel %vm854, %v857, %v860
    %v862 = vsel %vm852, nan, %v861
    %v863 = vmul.f32 %v206, %v400
    %v864 = vmul.f32 %v218, %v554
    %v865 = vmul.f32 %v230, %v708
    %v866 = vmul.f32 %v242, %v862
    %v867 = vand.u32 2147483647, %v243
    %vm868 = vcmp.le.f32.partialorder %v867, 0.7853982
    %vm869 = vcmp.lt.s32.totalorder %v243, 0
    %v870 = vand.u32 %v243, 2139095040
    %v871 = vshrl.u32 %v870, 23
    %v872 = vsub.s32 %v871, 127
    %v873 = vand.u32 2147483647, %v243
    %v874 = vand.u32 %v873, 8388607
    %v875 = vor.u32 %v874, 8388608
    %v876 = vsub.s32 0, %v875
    %v877 = vadd.s32 %v872, 1
    %vm878 = vcmp.gt.s32.totalorder %v877, 0
    %v879 = vsel %vm878, %v877, 0
    %v880 = vshrl.u32 %v879, 5
    %v881 = vand.u32 %v879, 31
    %v882 = vsub.s32 32, %v881
    %v883 = vshrl.u32 683565275, %v882
    %v884 = vshll.u32 683565275, %v881
    %v885 = vshrl.u32 2475754826, %v882
    %v886 = vor.u32 %v884, %v885
    %v887 = vshll.u32 2475754826, %v881
    %v888 = vshrl.u32 2131351028, %v882
    %v889 = vor.u32 %v887, %v888
    %v890 = vshll.u32 2131351028, %v881
    %v891 = vshrl.u32 2102212464, %v882
    %v892 = vor.u32 %v890, %v891
    %v893 = vshll.u32 2102212464, %v881
    %v894 = vshrl.u32 920167782, %v882
    %v895 = vor.u32 %v893, %v894
    %v896 = vshll.u32 920167782, %v881
    %v897 = vshrl.u32 1326507024, %v882
    %v898 = vor.u32 %v896, %v897
    %vm899 = vcmp.lt.s32.totalorder %v880, 1
    %vm900 = vcmp.lt.s32.totalorder %v880, 2
    %vm901 = vcmp.lt.s32.totalorder %v880, 3
    %vm902 = vcmp.lt.s32.totalorder %v880, 4
    %v903 = vsel %vm899, %v883, %v886
    %v904 = vsel %vm902, %v892, 2102212464
    %v905 = vsel %vm901, %v889, %v904
    %v906 = vsel %vm900, %v903, %v905
    %v907 = vsel %vm899, %v886, %v889
    %v908 = vsel %vm902, %v895, 920167782
    %v909 = vsel %vm901, %v892, %v908
    %v910 = vsel %vm900, %v907, %v909
    %v911 = vsel %vm899, %v889, %v892
    %v912 = vsel %vm902, %v898, 1326507024
    %v913 = vsel %vm901, %v895, %v912
    %v914 = vsel %vm900, %v911, %v913
    %v915 = vshll.u32 %v875, 8
    %v916 = vand.u32 %v915, 65535
    %v917 = vshrl.u32 %v915, 16
    %v918 = vand.u32 %v914, 65535
    %v919 = vshrl.u32 %v914, 16
    %v920 = vmul.u32 %v916, %v918
    %v921 = vmul.u32 %v916, %v919
    %v922 = vmul.u32 %v917, %v918
    %v923 = vmul.u32 %v917, %v919
    %v924 = vshll.u32 %v921, 16
    %v925 = vshrl.u32 %v921, 16
    %v926 = vshll.u32 %v922, 16
    %v927 = vshrl.u32 %v922, 16
    %vm928 = vc.u32 %v920, %v924
    %v929 = vsel %vm928, 1, 0
    %v930 = vadd.s32 %v920, %v924
    %v931 = vadd.s32 %v923, %v929
    %vm932 = vc.u32 %v930, %v926
    %v933 = vsel %vm932, 1, 0
    %v934 = vadd.s32 %v930, %v926
    %v935 = vadd.s32 %v931, %v933
    %v936 = vadd.s32 %v935, %v925
    %v937 = vadd.s32 %v936, %v927
    %v938 = vand.u32 %v915, 65535
    %v939 = vshrl.u32 %v915, 16
    %v940 = vand.u32 %v910, 65535
    %v941 = vshrl.u32 %v910, 16
    %v942 = vmul.u32 %v938, %v940
    %v943 = vmul.u32 %v938, %v941
    %v944 = vmul.u32 %v939, %v940
    %v945 = vmul.u32 %v939, %v941
    %v946 = vshll.u32 %v943, 16
    %v947 = vshrl.u32 %v943, 16
    %v948 = vshll.u32 %v944, 16
    %v949 = vshrl.u32 %v944, 16
    %vm950 = vc.u32 %v942, %v946
    %v951 = vsel %vm950, 1, 0
    %v952 = vadd.s32 %v942, %v946
    %v953 = vadd.s32 %v945, %v951
    %vm954 = vc.u32 %v952, %v948
    %v955 = vsel %vm954, 1, 0
    %v956 = vadd.s32 %v952, %v948
    %v957 = vadd.s32 %v953, %v955
    %v958 = vadd.s32 %v957, %v947
    %v959 = vadd.s32 %v958, %v949
    %v960 = vmul.u32 %v915, %v906
    %v961 = vadd.s32 %v937, %v956
    %vm962 = vc.u32 %v937, %v956
    %v963 = vadd.s32 %v959, 1
    %v964 = vsel %vm962, %v963, %v959
    %v965 = vadd.s32 %v960, %v964
    %v966 = vadd.s32 %v965, 536870912
    %v967 = vshrl.u32 %v966, 30
    %v968 = vshll.u32 %v967, 30
    %v969 = vsub.s32 %v965, %v968
    %vm970 = vcmp.lt.s32.totalorder %v969, 0
    %v971 = vsub.s32 0, %v969
    %v972 = vsel %vm970, %v971, %v969
    %v973 = vclz %v972
    %v974 = vsub.s32 %v973, 2
    %vm975 = vcmp.gt.s32.totalorder 0, %v974
    %v976 = vsel %vm975, 0, %v974
    %v977 = vsub.s32 32, %v976
    %v978 = vshll.u32 %v969, %v976
    %v979 = vshrl.u32 %v961, %v977
    %v980 = vor.u32 %v978, %v979
    %v981 = vsub.s32 4294967266, %v976
    %v982 = vadd.s32 %v981, 127
    %v983 = vshll.u32 %v982, 23
    %v984 = vor.u32 4788187, %v983
    %v985 = vand.u32 2147483647, %v984
    %v987 = vcvt.s32.f32 %v980
    %v988 = vmul.f32 %v987, %v985
    %v989 = vxor.u32 %v988, 2147483648
    %v990 = vsel %vm869, %v989, %v988
    %v991 = vsub.s32 4, %v967
    %v992 = vsel %vm869, %v991, %v967
    %v993 = vsel %vm868, %v243, %v990
    %v994 = vsel %vm868, 0, %v992
    %v995 = vmul.f32 %v993, %v993
    %v996 = vmul.f32 %v995, -0.001358992
    %v997 = vadd.f32 %v996, 0.041655596
    %v998 = vmul.f32 %v995, %v997
    %v999 = vadd.f32 %v998, -0.4999988
    %v1000 = vmul.f32 %v995, %v999
    %v1001 = vadd.f32 1.0, %v1000
    %v1002 = vmul.f32 %v993, %v993
    %v1003 = vmul.f32 %v1002, -0.00019511016
    %v1004 = vadd.f32 %v1003, 0.008332121
    %v1005 = vmul.f32 %v1002, %v1004
    %v1006 = vadd.f32 %v1005, -0.16666654
    %v1007 = vmul.f32 %v1002, %v1006
    %v1008 = vadd.f32 %v1007, 1.0
    %v1009 = vmul.f32 %v1008, %v993
    %vm1010 = vweird.f32 %v243
    %v1011 = vadd.s32 %v994, 3
    %v1012 = vand.u32 %v1011, 3
    %vm1013 = vcmp.lt.s32.totalorder %v1012, 2
    %vm1014 = vcmp.eq.s32.totalorder %v1012, 0
    %v1015 = vxor.u32 %v1009, 2147483648
    %v1016 = vsel %vm1014, %v1001, %v1015
    %vm1017 = vcmp.eq.s32.totalorder %v1012, 2
    %v1018 = vxor.u32 %v1001, 2147483648
    %v1019 = vsel %vm1017, %v1018, %v1009
    %v1020 = vsel %vm1013, %v1016, %v1019
    %v1021 = vsel %vm1010, nan, %v1020
    %v1022 = vand.u32 2147483647, %v244
    %vm1023 = vcmp.le.f32.partialorder %v1022, 0.7853982
    %vm1024 = vcmp.lt.s32.totalorder %v244, 0
    %v1025 = vand.u32 %v244, 2139095040
    %v1026 = vshrl.u32 %v1025, 23
    %v1027 = vsub.s32 %v1026, 127
    %v1028 = vand.u32 2147483647, %v244
    %v1029 = vand.u32 %v1028, 8388607
    %v1030 = vor.u32 %v1029, 8388608
    %v1031 = vsub.s32 0, %v1030
    %v1032 = vadd.s32 %v1027, 1
    %vm1033 = vcmp.gt.s32.totalorder %v1032, 0
    %v1034 = vsel %vm1033, %v1032, 0
    %v1035 = vshrl.u32 %v1034, 5
    %v1036 = vand.u32 %v1034, 31
    %v1037 = vsub.s32 32, %v1036
    %v1038 = vshrl.u32 683565275, %v1037
    %v1039 = vshll.u32 683565275, %v1036
    %v1040 = vshrl.u32 2475754826, %v1037
    %v1041 = vor.u32 %v1039, %v1040
    %v1042 = vshll.u32 2475754826, %v1036
    %v1043 = vshrl.u32 2131351028, %v1037
    %v1044 = vor.u32 %v1042, %v1043
    %v1045 = vshll.u32 2131351028, %v1036
    %v1046 = vshrl.u32 2102212464, %v1037
    %v1047 = vor.u32 %v1045, %v1046
    %v1048 = vshll.u32 2102212464, %v1036
    %v1049 = vshrl.u32 920167782, %v1037
    %v1050 = vor.u32 %v1048, %v1049
    %v1051 = vshll.u32 920167782, %v1036
    %v1052 = vshrl.u32 1326507024, %v1037
    %v1053 = vor.u32 %v1051, %v1052
    %vm1054 = vcmp.lt.s32.totalorder %v1035, 1
    %vm1055 = vcmp.lt.s32.totalorder %v1035, 2
    %vm1056 = vcmp.lt.s32.totalorder %v1035, 3
    %vm1057 = vcmp.lt.s32.totalorder %v1035, 4
    %v1058 = vsel %vm1054, %v1038, %v1041
    %v1059 = vsel %vm1057, %v1047, 2102212464
    %v1060 = vsel %vm1056, %v1044, %v1059
    %v1061 = vsel %vm1055, %v1058, %v1060
    %v1062 = vsel %vm1054, %v1041, %v1044
    %v1063 = vsel %vm1057, %v1050, 920167782
    %v1064 = vsel %vm1056, %v1047, %v1063
    %v1065 = vsel %vm1055, %v1062, %v1064
    %v1066 = vsel %vm1054, %v1044, %v1047
    %v1067 = vsel %vm1057, %v1053, 1326507024
    %v1068 = vsel %vm1056, %v1050, %v1067
    %v1069 = vsel %vm1055, %v1066, %v1068
    %v1070 = vshll.u32 %v1030, 8
    %v1071 = vand.u32 %v1070, 65535
    %v1072 = vshrl.u32 %v1070, 16
    %v1073 = vand.u32 %v1069, 65535
    %v1074 = vshrl.u32 %v1069, 16
    %v1075 = vmul.u32 %v1071, %v1073
    %v1076 = vmul.u32 %v1071, %v1074
    %v1077 = vmul.u32 %v1072, %v1073
    %v1078 = vmul.u32 %v1072, %v1074
    %v1079 = vshll.u32 %v1076, 16
    %v1080 = vshrl.u32 %v1076, 16
    %v1081 = vshll.u32 %v1077, 16
    %v1082 = vshrl.u32 %v1077, 16
    %vm1083 = vc.u32 %v1075, %v1079
    %v1084 = vsel %vm1083, 1, 0
    %v1085 = vadd.s32 %v1075, %v1079
    %v1086 = vadd.s32 %v1078, %v1084
    %vm1087 = vc.u32 %v1085, %v1081
    %v1088 = vsel %vm1087, 1, 0
    %v1089 = vadd.s32 %v1085, %v1081
    %v1090 = vadd.s32 %v1086, %v1088
    %v1091 = vadd.s32 %v1090, %v1080
    %v1092 = vadd.s32 %v1091, %v1082
    %v1093 = vand.u32 %v1070, 65535
    %v1094 = vshrl.u32 %v1070, 16
    %v1095 = vand.u32 %v1065, 65535
    %v1096 = vshrl.u32 %v1065, 16
    %v1097 = vmul.u32 %v1093, %v1095
    %v1098 = vmul.u32 %v1093, %v1096
    %v1099 = vmul.u32 %v1094, %v1095
    %v1100 = vmul.u32 %v1094, %v1096
    %v1101 = vshll.u32 %v1098, 16
    %v1102 = vshrl.u32 %v1098, 16
    %v1103 = vshll.u32 %v1099, 16
    %v1104 = vshrl.u32 %v1099, 16
    %vm1105 = vc.u32 %v1097, %v1101
    %v1106 = vsel %vm1105, 1, 0
    %v1107 = vadd.s32 %v1097, %v1101
    %v1108 = vadd.s32 %v1100, %v1106
    %vm1109 = vc.u32 %v1107, %v1103
    %v1110 = vsel %vm1109, 1, 0
    %v1111 = vadd.s32 %v1107, %v1103
    %v1112 = vadd.s32 %v1108, %v1110
    %v1113 = vadd.s32 %v1112, %v1102
    %v1114 = vadd.s32 %v1113, %v1104
    %v1115 = vmul.u32 %v1070, %v1061
    %v1116 = vadd.s32 %v1092, %v1111
    %vm1117 = vc.u32 %v1092, %v1111
    %v1118 = vadd.s32 %v1114, 1
    %v1119 = vsel %vm1117, %v1118, %v1114
    %v1120 = vadd.s32 %v1115, %v1119
    %v1121 = vadd.s32 %v1120, 536870912
    %v1122 = vshrl.u32 %v1121, 30
    %v1123 = vshll.u32 %v1122, 30
    %v1124 = vsub.s32 %v1120, %v1123
    %vm1125 = vcmp.lt.s32.totalorder %v1124, 0
    %v1126 = vsub.s32 0, %v1124
    %v1127 = vsel %vm1125, %v1126, %v1124
    %v1128 = vclz %v1127
    %v1129 = vsub.s32 %v1128, 2
    %vm1130 = vcmp.gt.s32.totalorder 0, %v1129
    %v1131 = vsel %vm1130, 0, %v1129
    %v1132 = vsub.s32 32, %v1131
    %v1133 = vshll.u32 %v1124, %v1131
    %v1134 = vshrl.u32 %v1116, %v1132
    %v1135 = vor.u32 %v1133, %v1134
    %v1136 = vsub.s32 4294967266, %v1131
    %v1137 = vadd.s32 %v1136, 127
    %v1138 = vshll.u32 %v1137, 23
    %v1139 = vor.u32 4788187, %v1138
    %v1140 = vand.u32 2147483647, %v1139
    %v1142 = vcvt.s32.f32 %v1135
    %v1143 = vmul.f32 %v1142, %v1140
    %v1144 = vxor.u32 %v1143, 2147483648
    %v1145 = vsel %vm1024, %v1144, %v1143
    %v1146 = vsub.s32 4, %v1122
    %v1147 = vsel %vm1024, %v1146, %v1122
    %v1148 = vsel %vm1023, %v244, %v1145
    %v1149 = vsel %vm1023, 0, %v1147
    %v1150 = vmul.f32 %v1148, %v1148
    %v1151 = vmul.f32 %v1150, -0.001358992
    %v1152 = vadd.f32 %v1151, 0.041655596
    %v1153 = vmul.f32 %v1150, %v1152
    %v1154 = vadd.f32 %v1153, -0.4999988
    %v1155 = vmul.f32 %v1150, %v1154
    %v1156 = vadd.f32 1.0, %v1155
    %v1157 = vmul.f32 %v1148, %v1148
    %v1158 = vmul.f32 %v1157, -0.00019511016
    %v1159 = vadd.f32 %v1158, 0.008332121
    %v1160 = vmul.f32 %v1157, %v1159
    %v1161 = vadd.f32 %v1160, -0.16666654
    %v1162 = vmul.f32 %v1157, %v1161
    %v1163 = vadd.f32 %v1162, 1.0
    %v1164 = vmul.f32 %v1163, %v1148
    %vm1165 = vweird.f32 %v244
    %v1166 = vadd.s32 %v1149, 3
    %v1167 = vand.u32 %v1166, 3
    %vm1168 = vcmp.lt.s32.totalorder %v1167, 2
    %vm1169 = vcmp.eq.s32.totalorder %v1167, 0
    %v1170 = vxor.u32 %v1164, 2147483648
    %v1171 = vsel %vm1169, %v1156, %v1170
    %vm1172 = vcmp.eq.s32.totalorder %v1167, 2
    %v1173 = vxor.u32 %v1156, 2147483648
    %v1174 = vsel %vm1172, %v1173, %v1164
    %v1175 = vsel %vm1168, %v1171, %v1174
    %v1176 = vsel %vm1165, nan, %v1175
    %v1177 = vand.u32 2147483647, %v245
    %vm1178 = vcmp.le.f32.partialorder %v1177, 0.7853982
    %vm1179 = vcmp.lt.s32.totalorder %v245, 0
    %v1180 = vand.u32 %v245, 2139095040
    %v1181 = vshrl.u32 %v1180, 23
    %v1182 = vsub.s32 %v1181, 127
    %v1183 = vand.u32 2147483647, %v245
    %v1184 = vand.u32 %v1183, 8388607
    %v1185 = vor.u32 %v1184, 8388608
    %v1186 = vsub.s32 0, %v1185
    %v1187 = vadd.s32 %v1182, 1
    %vm1188 = vcmp.gt.s32.totalorder %v1187, 0
    %v1189 = vsel %vm1188, %v1187, 0
    %v1190 = vshrl.u32 %v1189, 5
    %v1191 = vand.u32 %v1189, 31
    %v1192 = vsub.s32 32, %v1191
    %v1193 = vshrl.u32 683565275, %v1192
    %v1194 = vshll.u32 683565275, %v1191
    %v1195 = vshrl.u32 2475754826, %v1192
    %v1196 = vor.u32 %v1194, %v1195
    %v1197 = vshll.u32 2475754826, %v1191
    %v1198 = vshrl.u32 2131351028, %v1192
    %v1199 = vor.u32 %v1197, %v1198
    %v1200 = vshll.u32 2131351028, %v1191
    %v1201 = vshrl.u32 2102212464, %v1192
    %v1202 = vor.u32 %v1200, %v1201
    %v1203 = vshll.u32 2102212464, %v1191
    %v1204 = vshrl.u32 920167782, %v1192
    %v1205 = vor.u32 %v1203, %v1204
    %v1206 = vshll.u32 920167782, %v1191
    %v1207 = vshrl.u32 1326507024, %v1192
    %v1208 = vor.u32 %v1206, %v1207
    %vm1209 = vcmp.lt.s32.totalorder %v1190, 1
    %vm1210 = vcmp.lt.s32.totalorder %v1190, 2
    %vm1211 = vcmp.lt.s32.totalorder %v1190, 3
    %vm1212 = vcmp.lt.s32.totalorder %v1190, 4
    %v1213 = vsel %vm1209, %v1193, %v1196
    %v1214 = vsel %vm1212, %v1202, 2102212464
    %v1215 = vsel %vm1211, %v1199, %v1214
    %v1216 = vsel %vm1210, %v1213, %v1215
    %v1217 = vsel %vm1209, %v1196, %v1199
    %v1218 = vsel %vm1212, %v1205, 920167782
    %v1219 = vsel %vm1211, %v1202, %v1218
    %v1220 = vsel %vm1210, %v1217, %v1219
    %v1221 = vsel %vm1209, %v1199, %v1202
    %v1222 = vsel %vm1212, %v1208, 1326507024
    %v1223 = vsel %vm1211, %v1205, %v1222
    %v1224 = vsel %vm1210, %v1221, %v1223
    %v1225 = vshll.u32 %v1185, 8
    %v1226 = vand.u32 %v1225, 65535
    %v1227 = vshrl.u32 %v1225, 16
    %v1228 = vand.u32 %v1224, 65535
    %v1229 = vshrl.u32 %v1224, 16
    %v1230 = vmul.u32 %v1226, %v1228
    %v1231 = vmul.u32 %v1226, %v1229
    %v1232 = vmul.u32 %v1227, %v1228
    %v1233 = vmul.u32 %v1227, %v1229
    %v1234 = vshll.u32 %v1231, 16
    %v1235 = vshrl.u32 %v1231, 16
    %v1236 = vshll.u32 %v1232, 16
    %v1237 = vshrl.u32 %v1232, 16
    %vm1238 = vc.u32 %v1230, %v1234
    %v1239 = vsel %vm1238, 1, 0
    %v1240 = vadd.s32 %v1230, %v1234
    %v1241 = vadd.s32 %v1233, %v1239
    %vm1242 = vc.u32 %v1240, %v1236
    %v1243 = vsel %vm1242, 1, 0
    %v1244 = vadd.s32 %v1240, %v1236
    %v1245 = vadd.s32 %v1241, %v1243
    %v1246 = vadd.s32 %v1245, %v1235
    %v1247 = vadd.s32 %v1246, %v1237
    %v1248 = vand.u32 %v1225, 65535
    %v1249 = vshrl.u32 %v1225, 16
    %v1250 = vand.u32 %v1220, 65535
    %v1251 = vshrl.u32 %v1220, 16
    %v1252 = vmul.u32 %v1248, %v1250
    %v1253 = vmul.u32 %v1248, %v1251
    %v1254 = vmul.u32 %v1249, %v1250
    %v1255 = vmul.u32 %v1249, %v1251
    %v1256 = vshll.u32 %v1253, 16
    %v1257 = vshrl.u32 %v1253, 16
    %v1258 = vshll.u32 %v1254, 16
    %v1259 = vshrl.u32 %v1254, 16
    %vm1260 = vc.u32 %v1252, %v1256
    %v1261 = vsel %vm1260, 1, 0
    %v1262 = vadd.s32 %v1252, %v1256
    %v1263 = vadd.s32 %v1255, %v1261
    %vm1264 = vc.u32 %v1262, %v1258
    %v1265 = vsel %vm1264, 1, 0
    %v1266 = vadd.s32 %v1262, %v1258
    %v1267 = vadd.s32 %v1263, %v1265
    %v1268 = vadd.s32 %v1267, %v1257
    %v1269 = vadd.s32 %v1268, %v1259
    %v1270 = vmul.u32 %v1225, %v1216
    %v1271 = vadd.s32 %v1247, %v1266
    %vm1272 = vc.u32 %v1247, %v1266
    %v1273 = vadd.s32 %v1269, 1
    %v1274 = vsel %vm1272, %v1273, %v1269
    %v1275 = vadd.s32 %v1270, %v1274
    %v1276 = vadd.s32 %v1275, 536870912
    %v1277 = vshrl.u32 %v1276, 30
    %v1278 = vshll.u32 %v1277, 30
    %v1279 = vsub.s32 %v1275, %v1278
    %vm1280 = vcmp.lt.s32.totalorder %v1279, 0
    %v1281 = vsub.s32 0, %v1279
    %v1282 = vsel %vm1280, %v1281, %v1279
    %v1283 = vclz %v1282
    %v1284 = vsub.s32 %v1283, 2
    %vm1285 = vcmp.gt.s32.totalorder 0, %v1284
    %v1286 = vsel %vm1285, 0, %v1284
    %v1287 = vsub.s32 32, %v1286
    %v1288 = vshll.u32 %v1279, %v1286
    %v1289 = vshrl.u32 %v1271, %v1287
    %v1290 = vor.u32 %v1288, %v1289
    %v1291 = vsub.s32 4294967266, %v1286
    %v1292 = vadd.s32 %v1291, 127
    %v1293 = vshll.u32 %v1292, 23
    %v1294 = vor.u32 4788187, %v1293
    %v1295 = vand.u32 2147483647, %v1294
    %v1297 = vcvt.s32.f32 %v1290
    %v1298 = vmul.f32 %v1297, %v1295
    %v1299 = vxor.u32 %v1298, 2147483648
    %v1300 = vsel %vm1179, %v1299, %v1298
    %v1301 = vsub.s32 4, %v1277
    %v1302 = vsel %vm1179, %v1301, %v1277
    %v1303 = vsel %vm1178, %v245, %v1300
    %v1304 = vsel %vm1178, 0, %v1302
    %v1305 = vmul.f32 %v1303, %v1303
    %v1306 = vmul.f32 %v1305, -0.001358992
    %v1307 = vadd.f32 %v1306, 0.041655596
    %v1308 = vmul.f32 %v1305, %v1307
    %v1309 = vadd.f32 %v1308, -0.4999988
    %v1310 = vmul.f32 %v1305, %v1309
    %v1311 = vadd.f32 1.0, %v1310
    %v1312 = vmul.f32 %v1303, %v1303
    %v1313 = vmul.f32 %v1312, -0.00019511016
    %v1314 = vadd.f32 %v1313, 0.008332121
    %v1315 = vmul.f32 %v1312, %v1314
    %v1316 = vadd.f32 %v1315, -0.16666654
    %v1317 = vmul.f32 %v1312, %v1316
    %v1318 = vadd.f32 %v1317, 1.0
    %v1319 = vmul.f32 %v1318, %v1303
    %vm1320 = vweird.f32 %v245
    %v1321 = vadd.s32 %v1304, 3
    %v1322 = vand.u32 %v1321, 3
    %vm1323 = vcmp.lt.s32.totalorder %v1322, 2
    %vm1324 = vcmp.eq.s32.totalorder %v1322, 0
    %v1325 = vxor.u32 %v1319, 2147483648
    %v1326 = vsel %vm1324, %v1311, %v1325
    %vm1327 = vcmp.eq.s32.totalorder %v1322, 2
    %v1328 = vxor.u32 %v1311, 2147483648
    %v1329 = vsel %vm1327, %v1328, %v1319
    %v1330 = vsel %vm1323, %v1326, %v1329
    %v1331 = vsel %vm1320, nan, %v1330
    %v1332 = vand.u32 2147483647, %v246
    %vm1333 = vcmp.le.f32.partialorder %v1332, 0.7853982
    %vm1334 = vcmp.lt.s32.totalorder %v246, 0
    %v1335 = vand.u32 %v246, 2139095040
    %v1336 = vshrl.u32 %v1335, 23
    %v1337 = vsub.s32 %v1336, 127
    %v1338 = vand.u32 2147483647, %v246
    %v1339 = vand.u32 %v1338, 8388607
    %v1340 = vor.u32 %v1339, 8388608
    %v1341 = vsub.s32 0, %v1340
    %v1342 = vadd.s32 %v1337, 1
    %vm1343 = vcmp.gt.s32.totalorder %v1342, 0
    %v1344 = vsel %vm1343, %v1342, 0
    %v1345 = vshrl.u32 %v1344, 5
    %v1346 = vand.u32 %v1344, 31
    %v1347 = vsub.s32 32, %v1346
    %v1348 = vshrl.u32 683565275, %v1347
    %v1349 = vshll.u32 683565275, %v1346
    %v1350 = vshrl.u32 2475754826, %v1347
    %v1351 = vor.u32 %v1349, %v1350
    %v1352 = vshll.u32 2475754826, %v1346
    %v1353 = vshrl.u32 2131351028, %v1347
    %v1354 = vor.u32 %v1352, %v1353
    %v1355 = vshll.u32 2131351028, %v1346
    %v1356 = vshrl.u32 2102212464, %v1347
    %v1357 = vor.u32 %v1355, %v1356
    %v1358 = vshll.u32 2102212464, %v1346
    %v1359 = vshrl.u32 920167782, %v1347
    %v1360 = vor.u32 %v1358, %v1359
    %v1361 = vshll.u32 920167782, %v1346
    %v1362 = vshrl.u32 1326507024, %v1347
    %v1363 = vor.u32 %v1361, %v1362
    %vm1364 = vcmp.lt.s32.totalorder %v1345, 1
    %vm1365 = vcmp.lt.s32.totalorder %v1345, 2
    %vm1366 = vcmp.lt.s32.totalorder %v1345, 3
    %vm1367 = vcmp.lt.s32.totalorder %v1345, 4
    %v1368 = vsel %vm1364, %v1348, %v1351
    %v1369 = vsel %vm1367, %v1357, 2102212464
    %v1370 = vsel %vm1366, %v1354, %v1369
    %v1371 = vsel %vm1365, %v1368, %v1370
    %v1372 = vsel %vm1364, %v1351, %v1354
    %v1373 = vsel %vm1367, %v1360, 920167782
    %v1374 = vsel %vm1366, %v1357, %v1373
    %v1375 = vsel %vm1365, %v1372, %v1374
    %v1376 = vsel %vm1364, %v1354, %v1357
    %v1377 = vsel %vm1367, %v1363, 1326507024
    %v1378 = vsel %vm1366, %v1360, %v1377
    %v1379 = vsel %vm1365, %v1376, %v1378
    %v1380 = vshll.u32 %v1340, 8
    %v1381 = vand.u32 %v1380, 65535
    %v1382 = vshrl.u32 %v1380, 16
    %v1383 = vand.u32 %v1379, 65535
    %v1384 = vshrl.u32 %v1379, 16
    %v1385 = vmul.u32 %v1381, %v1383
    %v1386 = vmul.u32 %v1381, %v1384
    %v1387 = vmul.u32 %v1382, %v1383
    %v1388 = vmul.u32 %v1382, %v1384
    %v1389 = vshll.u32 %v1386, 16
    %v1390 = vshrl.u32 %v1386, 16
    %v1391 = vshll.u32 %v1387, 16
    %v1392 = vshrl.u32 %v1387, 16
    %vm1393 = vc.u32 %v1385, %v1389
    %v1394 = vsel %vm1393, 1, 0
    %v1395 = vadd.s32 %v1385, %v1389
    %v1396 = vadd.s32 %v1388, %v1394
    %vm1397 = vc.u32 %v1395, %v1391
    %v1398 = vsel %vm1397, 1, 0
    %v1399 = vadd.s32 %v1395, %v1391
    %v1400 = vadd.s32 %v1396, %v1398
    %v1401 = vadd.s32 %v1400, %v1390
    %v1402 = vadd.s32 %v1401, %v1392
    %v1403 = vand.u32 %v1380, 65535
    %v1404 = vshrl.u32 %v1380, 16
    %v1405 = vand.u32 %v1375, 65535
    %v1406 = vshrl.u32 %v1375, 16
    %v1407 = vmul.u32 %v1403, %v1405
    %v1408 = vmul.u32 %v1403, %v1406
    %v1409 = vmul.u32 %v1404, %v1405
    %v1410 = vmul.u32 %v1404, %v1406
    %v1411 = vshll.u32 %v1408, 16
    %v1412 = vshrl.u32 %v1408, 16
    %v1413 = vshll.u32 %v1409, 16
    %v1414 = vshrl.u32 %v1409, 16
    %vm1415 = vc.u32 %v1407, %v1411
    %v1416 = vsel %vm1415, 1, 0
    %v1417 = vadd.s32 %v1407, %v1411
    %v1418 = vadd.s32 %v1410, %v1416
    %vm1419 = vc.u32 %v1417, %v1413
    %v1420 = vsel %vm1419, 1, 0
    %v1421 = vadd.s32 %v1417, %v1413
    %v1422 = vadd.s32 %v1418, %v1420
    %v1423 = vadd.s32 %v1422, %v1412
    %v1424 = vadd.s32 %v1423, %v1414
    %v1425 = vmul.u32 %v1380, %v1371
    %v1426 = vadd.s32 %v1402, %v1421
    %vm1427 = vc.u32 %v1402, %v1421
    %v1428 = vadd.s32 %v1424, 1
    %v1429 = vsel %vm1427, %v1428, %v1424
    %v1430 = vadd.s32 %v1425, %v1429
    %v1431 = vadd.s32 %v1430, 536870912
    %v1432 = vshrl.u32 %v1431, 30
    %v1433 = vshll.u32 %v1432, 30
    %v1434 = vsub.s32 %v1430, %v1433
    %vm1435 = vcmp.lt.s32.totalorder %v1434, 0
    %v1436 = vsub.s32 0, %v1434
    %v1437 = vsel %vm1435, %v1436, %v1434
    %v1438 = vclz %v1437
    %v1439 = vsub.s32 %v1438, 2
    %vm1440 = vcmp.gt.s32.totalorder 0, %v1439
    %v1441 = vsel %vm1440, 0, %v1439
    %v1442 = vsub.s32 32, %v1441
    %v1443 = vshll.u32 %v1434, %v1441
    %v1444 = vshrl.u32 %v1426, %v1442
    %v1445 = vor.u32 %v1443, %v1444
    %v1446 = vsub.s32 4294967266, %v1441
    %v1447 = vadd.s32 %v1446, 127
    %v1448 = vshll.u32 %v1447, 23
    %v1449 = vor.u32 4788187, %v1448
    %v1450 = vand.u32 2147483647, %v1449
    %v1452 = vcvt.s32.f32 %v1445
    %v1453 = vmul.f32 %v1452, %v1450
    %v1454 = vxor.u32 %v1453, 2147483648
    %v1455 = vsel %vm1334, %v1454, %v1453
    %v1456 = vsub.s32 4, %v1432
    %v1457 = vsel %vm1334, %v1456, %v1432
    %v1458 = vsel %vm1333, %v246, %v1455
    %v1459 = vsel %vm1333, 0, %v1457
    %v1460 = vmul.f32 %v1458, %v1458
    %v1461 = vmul.f32 %v1460, -0.001358992
    %v1462 = vadd.f32 %v1461, 0.041655596
    %v1463 = vmul.f32 %v1460, %v1462
    %v1464 = vadd.f32 %v1463, -0.4999988
    %v1465 = vmul.f32 %v1460, %v1464
    %v1466 = vadd.f32 1.0, %v1465
    %v1467 = vmul.f32 %v1458, %v1458
    %v1468 = vmul.f32 %v1467, -0.00019511016
    %v1469 = vadd.f32 %v1468, 0.008332121
    %v1470 = vmul.f32 %v1467, %v1469
    %v1471 = vadd.f32 %v1470, -0.16666654
    %v1472 = vmul.f32 %v1467, %v1471
    %v1473 = vadd.f32 %v1472, 1.0
    %v1474 = vmul.f32 %v1473, %v1458
    %vm1475 = vweird.f32 %v246
    %v1476 = vadd.s32 %v1459, 3
    %v1477 = vand.u32 %v1476, 3
    %vm1478 = vcmp.lt.s32.totalorder %v1477, 2
    %vm1479 = vcmp.eq.s32.totalorder %v1477, 0
    %v1480 = vxor.u32 %v1474, 2147483648
    %v1481 = vsel %vm1479, %v1466, %v1480
    %vm1482 = vcmp.eq.s32.totalorder %v1477, 2
    %v1483 = vxor.u32 %v1466, 2147483648
    %v1484 = vsel %vm1482, %v1483, %v1474
    %v1485 = vsel %vm1478, %v1481, %v1484
    %v1486 = vsel %vm1475, nan, %v1485
    %v1487 = vmul.f32 %v206, %v1021
    %v1488 = vmul.f32 %v218, %v1176
    %v1489 = vmul.f32 %v230, %v1331
    %v1490 = vmul.f32 %v242, %v1486
    %v1491 = vld [vmem:[#allocation4] sm:$0xff]
    %v1492 = vld [vmem:[#allocation4 + $0x8] sm:$0xff]
    %v1493 = vld [vmem:[#allocation4 + $0x10] sm:$0xff]
    %v1494 = vld [vmem:[#allocation4 + $0x18] sm:$0xff]
    %v1495 = vmul.f32 %v863, 0.1
    %v1496 = vmul.f32 %v864, 0.1
    %v1497 = vmul.f32 %v865, 0.1
    %v1498 = vmul.f32 %v866, 0.1
    %v1499 = vadd.f32 %v1491, %v1495
    %v1500 = vadd.f32 %v1492, %v1496
    %v1501 = vadd.f32 %v1493, %v1497
    %v1502 = vadd.f32 %v1494, %v1498
    %1503 = vst [vmem:[#allocation7] sm:$0xff] %v1499
    %1504 = vst [vmem:[#allocation7 + $0x8] sm:$0xff] %v1500
    %1505 = vst [vmem:[#allocation7 + $0x10] sm:$0xff] %v1501
    %1506 = vst [vmem:[#allocation7 + $0x18] sm:$0xff] %v1502
    %v1507 = vld [vmem:[#allocation4 + $0x20] sm:$0xff]
    %v1508 = vld [vmem:[#allocation4 + $0x28] sm:$0xff]
    %v1509 = vld [vmem:[#allocation4 + $0x30] sm:$0xff]
    %v1510 = vld [vmem:[#allocation4 + $0x38] sm:$0xff]
    %v1511 = vmul.f32 %v1487, 0.1
    %v1512 = vmul.f32 %v1488, 0.1
    %v1513 = vmul.f32 %v1489, 0.1
    %v1514 = vmul.f32 %v1490, 0.1
    %v1515 = vadd.f32 %v1507, %v1511
    %v1516 = vadd.f32 %v1508, %v1512
    %v1517 = vadd.f32 %v1509, %v1513
    %v1518 = vadd.f32 %v1510, %v1514
    %1519 = vst [vmem:[#allocation7 + $0x20] sm:$0xff] %v1515
    %1520 = vst [vmem:[#allocation7 + $0x28] sm:$0xff] %v1516
    %1521 = vst [vmem:[#allocation7 + $0x30] sm:$0xff] %v1517
    %1522 = vst [vmem:[#allocation7 + $0x38] sm:$0xff] %v1518
    // Predicated region
    $region10: #{tpu_custom_call.1} parent=1 // pred_check
      _
    $region11: #{tpu_custom_call.1} parent=1 // pred_check_branch
      %1524 = sbr.rel (0) target = $region13
    $region12: #{tpu_custom_call.1} parent=1 // pred_region
      %1526 = vsyncadd [#allocation6], 0
      %s1528 = sshll.u32 [#allocation7], 4
      %s1529 = int_to_ptr.vmem [resolvable:$true] %s1528
      %s1530 = sshll.u32 %s2, 4
      %s1531 = int_to_ptr.hbm [resolvable:$true] %s1530
      %1533 = dma.vmem_to_hbm [thread:$0]  %s1529, 1024, %s1531, [#allocation6]
    $region13: #{tpu_custom_call.1} parent=1 // pred_fallthru
      _
    // Predicated region
    $region14: #{tpu_custom_call.1} parent=1 // pred_check
      _
    $region15: #{tpu_custom_call.1} parent=1 // pred_check_branch
      %1535 = sbr.rel (0) target = $region17
    $region16: #{tpu_custom_call.1} parent=1 // pred_region
      %1537 = dma.done [#allocation6], 1024
    $region17: #{tpu_custom_call.1} parent=1 // pred_fallthru
      _
    %1538 = vsyncpa [#allocation5], 1
    %1539 = vsyncpa [#allocation6], 1

</llo_original>
